<compile_context>
chip_gen: v7x
topology: tpu7x:2x2x1
jax: 0.10.0
libtpu: 0.0.40
codegen_flags: <defaults>
</compile_context>

<pallas_src>
import functools

import jax
import jax.numpy as jnp
from jax import lax
from jax.experimental import pallas as pl
from jax.experimental.pallas import tpu as pltpu

ACT_DTYPE = jnp.bfloat16
VMEM_LIMIT = 48 * 1024 * 1024   # budgeted below v7x's 64 MiB/TC, fine on v5e/v6e


def _round_up(x, m):
    return (x + m - 1) // m * m


# ---------------------------------------------------------------------------
# LayerNorm (row-tiled, f32 statistics)
# ---------------------------------------------------------------------------

def _layernorm_kernel(x_ref, g_ref, b_ref, o_ref, *, eps):
    x = x_ref[...].astype(jnp.float32)
    mu = jnp.mean(x, axis=-1, keepdims=True)
    var = jnp.mean(jnp.square(x - mu), axis=-1, keepdims=True)
    y = (x - mu) * lax.rsqrt(var + eps)
    y = y * g_ref[...].astype(jnp.float32) + b_ref[...].astype(jnp.float32)
    o_ref[...] = y.astype(o_ref.dtype)


def layernorm(x, gamma, beta, eps=1e-5, tm=256):
    M, H = x.shape
    tm = min(tm, _round_up(M, 8))
    Mp = _round_up(M, tm)
    xp = jnp.pad(x, ((0, Mp - M), (0, 0))) if Mp != M else x
    out = pl.pallas_call(
        functools.partial(_layernorm_kernel, eps=eps),
        out_shape=jax.ShapeDtypeStruct((Mp, H), x.dtype),
        grid=(Mp // tm,),
        in_specs=[pl.BlockSpec((tm, H), lambda i: (i, 0)),
                  pl.BlockSpec((1, H), lambda i: (0, 0)),
                  pl.BlockSpec((1, H), lambda i: (0, 0))],
        out_specs=pl.BlockSpec((tm, H), lambda i: (i, 0)),
        compiler_params=pltpu.CompilerParams(
            dimension_semantics=("parallel",),
            vmem_limit_bytes=VMEM_LIMIT),
    )(xp, gamma, beta)
    return out[:M] if Mp != M else out


# ---------------------------------------------------------------------------
# Tiled matmul with fused bias / GELU / residual (bf16 MXU, f32 accumulator)
# ---------------------------------------------------------------------------

def _matmul_kernel(*refs, activation, has_residual):
    if has_residual:
        x_ref, w_ref, b_ref, r_ref, o_ref, acc_ref = refs
    else:
        x_ref, w_ref, b_ref, o_ref, acc_ref = refs
        r_ref = None

    @pl.when(pl.program_id(2) == 0)
    def _init():
        acc_ref[...] = jnp.zeros_like(acc_ref)

    acc_ref[...] += jnp.dot(x_ref[...], w_ref[...],
                            preferred_element_type=jnp.float32)

    @pl.when(pl.program_id(2) == pl.num_programs(2) - 1)
    def _finish():
        y = acc_ref[...] + b_ref[...].astype(jnp.float32)
        if activation == "gelu":
            # FT GPT-NeoX MLP uses the tanh-approx GELU.
            y = jax.nn.gelu(y, approximate=True)
        if has_residual:
            y = y + r_ref[...].astype(jnp.float32)
        o_ref[...] = y.astype(o_ref.dtype)


def linear(x, w, b, activation=None, residual=None, out_dtype=None,
           tm=256, tn=512, tk=512):
    """y = act(x @ w + b) (+ residual); (M, N, K)-tiled with K innermost."""
    M, K = x.shape
    N = w.shape[1]
    out_dtype = out_dtype or x.dtype
    tm = min(tm, _round_up(M, 8))
    tk = K if K <= tk else tk
    tn = N if N <= tn else tn
    Mp, Kp, Np = _round_up(M, tm), _round_up(K, tk), _round_up(N, tn)
    xp = jnp.pad(x, ((0, Mp - M), (0, Kp - K))) if (Mp, Kp) != (M, K) else x
    wp = jnp.pad(w, ((0, Kp - K), (0, Np - N))) if (Kp, Np) != (K, N) else w
    bp = jnp.pad(b, ((0, 0), (0, Np - N))) if Np != N else b

    operands = [xp, wp, bp]
    in_specs = [pl.BlockSpec((tm, tk), lambda i, j, k: (i, k)),
                pl.BlockSpec((tk, tn), lambda i, j, k: (k, j)),
                pl.BlockSpec((1, tn), lambda i, j, k: (0, j))]
    if residual is not None:
        rp = (jnp.pad(residual, ((0, Mp - M), (0, Np - N)))
              if (Mp, Np) != (M, N) else residual)
        operands.append(rp)
        in_specs.append(pl.BlockSpec((tm, tn), lambda i, j, k: (i, j)))

    out = pl.pallas_call(
        functools.partial(_matmul_kernel, activation=activation,
                          has_residual=residual is not None),
        out_shape=jax.ShapeDtypeStruct((Mp, Np), out_dtype),
        grid=(Mp // tm, Np // tn, Kp // tk),
        in_specs=in_specs,
        out_specs=pl.BlockSpec((tm, tn), lambda i, j, k: (i, j)),
        scratch_shapes=[pltpu.VMEM((tm, tn), jnp.float32)],
        compiler_params=pltpu.CompilerParams(
            dimension_semantics=("parallel", "parallel", "arbitrary"),
            vmem_limit_bytes=VMEM_LIMIT),
    )(*operands)
    return out[:M, :N] if (Mp, Np) != (M, N) else out


# ---------------------------------------------------------------------------
# Attention: one kernel for causal prefill and KV-cache decode.
# q/k/v blocks are (1, T, H) -> lane-dense HBM tiles (last dim = nh*dh).
# ---------------------------------------------------------------------------

def _attention_kernel(pos_ref, q_ref, k_ref, v_ref, o_ref, *, nh, dh, scale):
    b = pl.program_id(0)
    off = pos_ref[b]                                   # absolute position of q row 0
    # Fold 1/sqrt(dh) into q once (O(T*d)) instead of scaling the score matrix.
    q = (q_ref[0].astype(jnp.float32) * scale).astype(jnp.bfloat16)   # (Tq, H)
    k = k_ref[0]                                       # (Tkv, H), rotary already applied
    v = v_ref[0]                                       # (Tkv, H)
    tq, tkv = q.shape[0], k.shape[0]
    row = lax.broadcasted_iota(jnp.int32, (tq, tkv), 0)
    col = lax.broadcasted_iota(jnp.int32, (tq, tkv), 1)
    mask = col <= (row + off)                          # causal / valid-cache-length mask
    # TODO(synk): static unroll over heads; switch to a flash-style (q,kv)-block grid
    #             with online softmax for long sequences (monolithic is fine T<=~512).
    for h in range(nh):
        sl = slice(h * dh, (h + 1) * dh)
        s = lax.dot_general(q[:, sl], k[:, sl], (((1,), (1,)), ((), ())),
                            preferred_element_type=jnp.float32)       # q @ k^T
        s = jnp.where(mask, s, -jnp.inf)               # f32 mask (bf16-safe)
        m = jnp.max(s, axis=-1, keepdims=True)
        p = jnp.exp(s - m)
        denom = jnp.sum(p, axis=-1, keepdims=True)
        p = p * pl.reciprocal(denom, approx=True)      # EUP instead of VALU divide
        ctx = jnp.dot(p.astype(jnp.bfloat16), v[:, sl],
                      preferred_element_type=jnp.float32)
        o_ref[0, :, sl] = ctx.astype(o_ref.dtype)


def attention(q, k, v, pos, scale, nh, dh):
    """q: (B, Tq, H); k, v: (B, Tkv, H); pos: (B,) int32 absolute position of q row 0.
    Row r attends to columns <= pos + r (prefill: pos=0 -> causal; decode: Tq=1)."""
    B, Tq, H = q.shape
    Tkv = k.shape[1]
    q_spec = pl.BlockSpec((1, Tq, H), lambda b, p_ref: (b, 0, 0))
    kv_spec = pl.BlockSpec((1, Tkv, H), lambda b, p_ref: (b, 0, 0))
    grid_spec = pltpu.PrefetchScalarGridSpec(
        num_scalar_prefetch=1,
        grid=(B,),
        in_specs=[q_spec, kv_spec, kv_spec],
        out_specs=q_spec,
    )
    return pl.pallas_call(
        functools.partial(_attention_kernel, nh=nh, dh=dh, scale=scale),
        grid_spec=grid_spec,
        out_shape=jax.ShapeDtypeStruct((B, Tq, H), q.dtype),
        compiler_params=pltpu.CompilerParams(
            dimension_semantics=("parallel",),
            vmem_limit_bytes=VMEM_LIMIT),
    )(pos, q, k, v)


# ---------------------------------------------------------------------------
# Rotary embedding (GPT-NeoX rotate-half) -- plain-JAX glue
# ---------------------------------------------------------------------------

def _rope_tables(positions, rot, base=10000.0):
    inv_freq = 1.0 / (base ** (jnp.arange(0, rot, 2, dtype=jnp.float32) / rot))
    freqs = positions.astype(jnp.float32)[:, None] * inv_freq[None, :]   # (P, rot/2)
    emb = jnp.concatenate([freqs, freqs], axis=-1)                       # (P, rot)
    return jnp.cos(emb), jnp.sin(emb)


def apply_rope(x, cos, sin, nh, dh, rot):
    # x: (B, P, H); cos/sin: (P, rot) f32. Rotate-half on the first `rot` dims/head.
    B, P, H = x.shape
    xf = x.astype(jnp.float32).reshape(B, P, nh, dh)
    xr, xpass = xf[..., :rot], xf[..., rot:]
    half = rot // 2
    rotated = jnp.concatenate([-xr[..., half:], xr[..., :half]], axis=-1)
    out = xr * cos[None, :, None, :] + rotated * sin[None, :, None, :]
    if rot < dh:
        out = jnp.concatenate([out, xpass], axis=-1)
    return out.reshape(B, P, H).astype(x.dtype)


# ---------------------------------------------------------------------------
# Model: prefill (full prompt) + single-token decode with KV cache
# ---------------------------------------------------------------------------

def _transformer_layer_tail(x, ctx_rows, lp):
    """attention dense (+residual) -> LN2 -> fc1(gelu) -> fc2 (+residual)."""
    x = linear(ctx_rows, lp["w_attn_dense"], lp["b_attn_dense"], residual=x)
    ln2 = layernorm(x, lp["ln2_w"], lp["ln2_b"])
    h1 = linear(ln2, lp["w_fc1"], lp["b_fc1"], activation="gelu")
    return linear(h1, lp["w_fc2"], lp["b_fc2"], residual=x)


def prefill(params, tokens, cfg):
    """Full forward over the prompt -> (last-token logits, K caches, V caches)."""
    B, T = tokens.shape
    H, nh, dh = cfg["hidden"], cfg["head_num"], cfg["size_per_head"]
    rot = cfg["rotary_dim"]
    scale = 1.0 / (dh ** 0.5)
    # TODO(synk): embedding gather stays in plain JAX (no clean Pallas equivalent).
    x = jnp.take(params["wte"], tokens, axis=0).reshape(B * T, H)
    cos, sin = _rope_tables(jnp.arange(T, dtype=jnp.int32), rot)
    pos0 = jnp.zeros((B,), jnp.int32)
    k_caches, v_caches = [], []
    for lp in params["layers"]:
        ln1 = layernorm(x, lp["ln1_w"], lp["ln1_b"])
        # TODO(synk): QKV layout = 3 contiguous H blocks (real FT/GPT-NeoX checkpoints
        #             interleave per head and need a permutation on load).
        qkv = linear(ln1, lp["w_qkv"], lp["b_qkv"]).reshape(B, T, 3, H)
        q, k, v = qkv[:, :, 0], qkv[:, :, 1], qkv[:, :, 2]          # (B, T, H)
        q = apply_rope(q, cos, sin, nh, dh, rot)
        k = apply_rope(k, cos, sin, nh, dh, rot)
        ctx = attention(q, k, v, pos0, scale, nh, dh)               # (B, T, H)
        k_caches.append(k)
        v_caches.append(v)
        x = _transformer_layer_tail(x, ctx.reshape(B * T, H), lp)
    xf = layernorm(x, params["final_ln_w"], params["final_ln_b"])
    # lm_head only for the last prompt position (decode never needs the rest).
    last = xf.reshape(B, T, H)[:, T - 1, :]
    logits = linear(last, params["lm_head_T"], params["zero_bias_vocab"],
                    out_dtype=jnp.float32)
    return logits, k_caches, v_caches


def decode_step(params, k_caches, v_caches, tok, pos, cfg):
    """One greedy decode step with KV cache; `tok` sits at absolute position `pos`."""
    H, nh, dh = cfg["hidden"], cfg["head_num"], cfg["size_per_head"]
    rot = cfg["rotary_dim"]
    scale = 1.0 / (dh ** 0.5)
    B = tok.shape[0]
    x = jnp.take(params["wte"], tok, axis=0)                        # (B, H)
    cos, sin = _rope_tables(jnp.reshape(pos, (1,)), rot)            # (1, rot)
    pos_arr = jnp.full((B,), pos, dtype=jnp.int32)
    new_k, new_v = [], []
    for l, lp in enumerate(params["layers"]):
        ln1 = layernorm(x, lp["ln1_w"], lp["ln1_b"])
        qkv = linear(ln1, lp["w_qkv"], lp["b_qkv"])                 # (B, 3H)
        q, k, v = qkv[:, :H], qkv[:, H:2 * H], qkv[:, 2 * H:]
        q = apply_rope(q[:, None, :], cos, sin, nh, dh, rot)        # (B, 1, H)
        k = apply_rope(k[:, None, :], cos, sin, nh, dh, rot)
        kc = lax.dynamic_update_slice_in_dim(k_caches[l], k, pos, axis=1)
        vc = lax.dynamic_update_slice_in_dim(v_caches[l], v[:, None, :], pos, axis=1)
        new_k.append(kc)
        new_v.append(vc)
        ctx = attention(q, kc, vc, pos_arr, scale, nh, dh)          # (B, 1, H)
        x = _transformer_layer_tail(x, ctx[:, 0, :], lp)
    xf = layernorm(x, params["final_ln_w"], params["final_ln_b"])
    logits = linear(xf, params["lm_head_T"], params["zero_bias_vocab"],
                    out_dtype=jnp.float32)
    next_tok = jnp.argmax(logits, axis=-1).astype(jnp.int32)
    return next_tok, new_k, new_v


def gptneox_generate(start_ids, start_lengths, output_len, params, cfg):
    """Greedy decode (beam_width=1). Returns output_ids (B, 1, input_len+output_len)."""
    del start_lengths  # TODO(synk): ragged per-example prompt lengths not supported.
    B, input_len = start_ids.shape
    total_len = input_len + output_len
    cache_len = _round_up(total_len, 8)       # keep the KV sublane dim 8-aligned

    prefill_fn = jax.jit(functools.partial(prefill, cfg=cfg))
    decode_fn = jax.jit(functools.partial(decode_step, cfg=cfg))

    logits, k_caches, v_caches = prefill_fn(params, start_ids)
    pad = cache_len - input_len
    k_caches = [jnp.pad(c, ((0, 0), (0, pad), (0, 0))) for c in k_caches]
    v_caches = [jnp.pad(c, ((0, 0), (0, pad), (0, 0))) for c in v_caches]

    next_tok = jnp.argmax(logits, axis=-1).astype(jnp.int32)        # (B,)
    generated = [next_tok[:, None]]
    for i in range(output_len - 1):
        pos = jnp.array(input_len + i, dtype=jnp.int32)
        next_tok, k_caches, v_caches = decode_fn(params, k_caches, v_caches,
                                                 next_tok, pos)
        generated.append(next_tok[:, None])
    tokens = jnp.concatenate([start_ids] + generated, axis=1)       # (B, total_len)
    return tokens[:, None, :]                                       # (B, beam=1, total)


# ---------------------------------------------------------------------------
# Parameter init (random, matching the FT weight list semantics; bf16 weights)
# ---------------------------------------------------------------------------

def init_params(key, cfg):
    H, inter, vocab, L = cfg["hidden"], cfg["inter"], cfg["vocab"], cfg["layer_num"]
    std = 0.02

    def nxt():
        nonlocal key
        key, sub = jax.random.split(key)
        return sub

    def rand(shape):
        return (std * jax.random.normal(nxt(), shape, jnp.float32)).astype(ACT_DTYPE)

    layers = []
    for _ in range(L):
        layers.append(dict(
            ln1_w=jnp.ones((1, H), jnp.float32),
            ln1_b=jnp.zeros((1, H), jnp.float32),
            w_qkv=rand((H, 3 * H)), b_qkv=rand((1, 3 * H)),
            w_attn_dense=rand((H, H)), b_attn_dense=rand((1, H)),
            w_fc1=rand((H, inter)), b_fc1=rand((1, inter)),
            w_fc2=rand((inter, H)), b_fc2=rand((1, H)),
            ln2_w=jnp.ones((1, H), jnp.float32),
            ln2_b=jnp.zeros((1, H), jnp.float32),
        ))
    wte = rand((vocab, H))
    lm_head = rand((vocab, H))
    return dict(
        layers=layers,
        wte=wte,
        final_ln_w=jnp.ones((1, H), jnp.float32),
        final_ln_b=jnp.zeros((1, H), jnp.float32),
        lm_head_T=jnp.transpose(lm_head),                 # (H, vocab)
        zero_bias_vocab=jnp.zeros((1, vocab), ACT_DTYPE),
    )


if __name__ == "__main__":
    cfg = dict(
        head_num=4,
        size_per_head=8,
        hidden=32,            # head_num * size_per_head
        inter=128,            # 4 * hidden
        vocab=256,
        rotary_dim=8,         # rotary_embedding_dim == size_per_head
        layer_num=2,
        max_seq_len=32,
        start_id=1,
        end_id=2,
    )
    key = jax.random.PRNGKey(0)
    key, pk, ik = jax.random.split(key, 3)
    params = init_params(pk, cfg)

    batch, input_len, output_len = 2, 8, 4
    start_ids = jax.random.randint(ik, (batch, input_len), 3, cfg["vocab"], dtype=jnp.int32)
    start_lengths = jnp.full((batch,), input_len, dtype=jnp.int32)

    output_ids = gptneox_generate(start_ids, start_lengths, output_len, params, cfg)
    output_ids = jax.block_until_ready(output_ids)
    assert output_ids.shape == (batch, 1, input_len + output_len)
    print("KERNEL_OK")
</pallas_src>

<mosaic_0001>
module attributes {stable_mosaic.version = 11 : i64} {
  func.func @_matmul_kernel(%arg0: i32, %arg1: i32, %arg2: i32, %arg3: memref<16x32xbf16, #tpu.memory_space<vmem>>, %arg4: memref<32x96xbf16, #tpu.memory_space<vmem>>, %arg5: memref<1x96xbf16, #tpu.memory_space<vmem>>, %arg6: memref<16x96xbf16, #tpu.memory_space<vmem>>, %arg7: memref<16x96xf32, #tpu.memory_space<vmem>>) attributes {dimension_semantics = [#tpu.dimension_semantics<parallel>, #tpu.dimension_semantics<parallel>, #tpu.dimension_semantics<arbitrary>], iteration_bounds = array<i64: 1, 1, 1>, scalar_prefetch = 0 : i64, scratch_operands = 1 : i64, tpu.core_type = #tpu.core_type<tc>, window_params = [{transform_indices = @transform_0, window_bounds = array<i64: 16, 32>}, {transform_indices = @transform_1, window_bounds = array<i64: 32, 96>}, {transform_indices = @transform_2, window_bounds = array<i64: 1, 96>}, {transform_indices = @transform_3, window_bounds = array<i64: 16, 96>}]} {
    %c0_i32 = arith.constant 0 : i32
    %0 = arith.cmpi eq, %arg2, %c0_i32 : i32
    %1 = arith.extui %0 : i1 to i32
    %c0_i32_0 = arith.constant 0 : i32
    %2 = arith.cmpi ne, %1, %c0_i32_0 : i32
    scf.if %2 {
      %cst_10 = arith.constant 0.000000e+00 : f32
      %12 = vector.broadcast %cst_10 : f32 to vector<16x96xf32>
      %c0_11 = arith.constant 0 : index
      %c0_12 = arith.constant 0 : index
      %13 = vector.load %arg7[%c0_11, %c0_12] : memref<16x96xf32, #tpu.memory_space<vmem>>, vector<16x96xf32>
      tpu.vector_store %arg7[%c0_11, %c0_12], %12 {strides = array<i32>} : memref<16x96xf32, #tpu.memory_space<vmem>>, vector<16x96xf32>,
    } else {
    }
    %c0 = arith.constant 0 : index
    %c0_1 = arith.constant 0 : index
    %3 = vector.load %arg7[%c0, %c0_1] : memref<16x96xf32, #tpu.memory_space<vmem>>, vector<16x96xf32>
    %c0_2 = arith.constant 0 : index
    %c0_3 = arith.constant 0 : index
    %4 = vector.load %arg3[%c0_2, %c0_3] : memref<16x32xbf16, #tpu.memory_space<vmem>>, vector<16x32xbf16>
    %c0_4 = arith.constant 0 : index
    %c0_5 = arith.constant 0 : index
    %5 = vector.load %arg4[%c0_4, %c0_5] : memref<32x96xbf16, #tpu.memory_space<vmem>>, vector<32x96xbf16>
    %cst = arith.constant dense<0.000000e+00> : vector<16x96xf32>
    %6 = tpu.matmul %4, %5, %cst {dimension_numbers = #tpu.dot_dimension_numbers<[1], [0], [0], [1], [0, 0, 1, 1], [], []>} : vector<16x32xbf16>, vector<32x96xbf16>, vector<16x96xf32> -> vector<16x96xf32>
    %7 = arith.addf %3, %6 : vector<16x96xf32>
    %c0_6 = arith.constant 0 : index
    %c0_7 = arith.constant 0 : index
    %8 = vector.load %arg7[%c0_6, %c0_7] : memref<16x96xf32, #tpu.memory_space<vmem>>, vector<16x96xf32>
    tpu.vector_store %arg7[%c0_6, %c0_7], %7 {strides = array<i32>} : memref<16x96xf32, #tpu.memory_space<vmem>>, vector<16x96xf32>,
    %c0_i32_8 = arith.constant 0 : i32
    %9 = arith.cmpi eq, %arg2, %c0_i32_8 : i32
    %10 = arith.extui %9 : i1 to i32
    %c0_i32_9 = arith.constant 0 : i32
    %11 = arith.cmpi ne, %10, %c0_i32_9 : i32
    scf.if %11 {
      %c0_10 = arith.constant 0 : index
      %c0_11 = arith.constant 0 : index
      %12 = vector.load %arg7[%c0_10, %c0_11] : memref<16x96xf32, #tpu.memory_space<vmem>>, vector<16x96xf32>
      %c0_12 = arith.constant 0 : index
      %c0_13 = arith.constant 0 : index
      %13 = vector.load %arg5[%c0_12, %c0_13] : memref<1x96xbf16, #tpu.memory_space<vmem>>, vector<1x96xbf16>
      %14 = arith.extf %13 : vector<1x96xbf16> to vector<1x96xf32>
      %15 = vector.broadcast %14 : vector<1x96xf32> to vector<16x96xf32>
      %16 = arith.addf %12, %15 : vector<16x96xf32>
      %17 = arith.truncf %16 : vector<16x96xf32> to vector<16x96xbf16>
      %c0_14 = arith.constant 0 : index
      %c0_15 = arith.constant 0 : index
      %18 = vector.load %arg6[%c0_14, %c0_15] : memref<16x96xbf16, #tpu.memory_space<vmem>>, vector<16x96xbf16>
      tpu.vector_store %arg6[%c0_14, %c0_15], %17 {strides = array<i32>} : memref<16x96xbf16, #tpu.memory_space<vmem>>, vector<16x96xbf16>,
    } else {
    }
    return
  }
  func.func @transform_0(%arg0: i32, %arg1: i32, %arg2: i32) -> (i32, i32) {
    %c0_i32 = arith.constant 0 : i32
    return %arg0, %arg2 : i32, i32
  }
  func.func @transform_1(%arg0: i32, %arg1: i32, %arg2: i32) -> (i32, i32) {
    %c0_i32 = arith.constant 0 : i32
    return %arg2, %arg1 : i32, i32
  }
  func.func @transform_2(%arg0: i32, %arg1: i32, %arg2: i32) -> (i32, i32) {
    %c0_i32 = arith.constant 0 : i32
    %c0_i32_0 = arith.constant 0 : i32
    return %c0_i32, %arg1 : i32, i32
  }
  func.func @transform_3(%arg0: i32, %arg1: i32, %arg2: i32) -> (i32, i32) {
    %c0_i32 = arith.constant 0 : i32
    return %arg0, %arg1 : i32, i32
  }
}

module attributes {stable_mosaic.version = 11 : i64} {
  func.func @_layernorm_kernel(%arg0: i32, %arg1: memref<16x32xbf16, #tpu.memory_space<vmem>>, %arg2: memref<1x32xf32, #tpu.memory_space<vmem>>, %arg3: memref<1x32xf32, #tpu.memory_space<vmem>>, %arg4: memref<16x32xbf16, #tpu.memory_space<vmem>>) attributes {dimension_semantics = [#tpu.dimension_semantics<parallel>], iteration_bounds = array<i64: 1>, scalar_prefetch = 0 : i64, scratch_operands = 0 : i64, tpu.core_type = #tpu.core_type<tc>, window_params = [{transform_indices = @transform_0, window_bounds = array<i64: 16, 32>}, {pipeline_mode = #tpu.pipeline_mode<synchronous>, transform_indices = @transform_1, window_bounds = array<i64: 1, 32>}, {pipeline_mode = #tpu.pipeline_mode<synchronous>, transform_indices = @transform_2, window_bounds = array<i64: 1, 32>}, {transform_indices = @transform_3, window_bounds = array<i64: 16, 32>}]} {
    %c0 = arith.constant 0 : index
    %c0_0 = arith.constant 0 : index
    %0 = vector.load %arg1[%c0, %c0_0] : memref<16x32xbf16, #tpu.memory_space<vmem>>, vector<16x32xbf16>
    %1 = arith.extf %0 : vector<16x32xbf16> to vector<16x32xf32>
    %cst = arith.constant dense<0.000000e+00> : vector<16xf32>
    %2 = vector.multi_reduction <add>, %1, %cst [1] : vector<16x32xf32> to vector<16xf32>
    %3 = vector.shape_cast %2 : vector<16xf32> to vector<16x1xf32>
    %cst_1 = arith.constant 3.200000e+01 : f32
    %4 = vector.broadcast %cst_1 : f32 to vector<16x1xf32>
    %5 = arith.divf %3, %4 : vector<16x1xf32>
    %6 = vector.broadcast %5 : vector<16x1xf32> to vector<16x32xf32>
    %7 = arith.subf %1, %6 : vector<16x32xf32>
    %8 = arith.mulf %7, %7 : vector<16x32xf32>
    %cst_2 = arith.constant dense<0.000000e+00> : vector<16xf32>
    %9 = vector.multi_reduction <add>, %8, %cst_2 [1] : vector<16x32xf32> to vector<16xf32>
    %10 = vector.shape_cast %9 : vector<16xf32> to vector<16x1xf32>
    %cst_3 = arith.constant 3.200000e+01 : f32
    %11 = vector.broadcast %cst_3 : f32 to vector<16x1xf32>
    %12 = arith.divf %10, %11 : vector<16x1xf32>
    %13 = vector.broadcast %5 : vector<16x1xf32> to vector<16x32xf32>
    %14 = arith.subf %1, %13 : vector<16x32xf32>
    %cst_4 = arith.constant 9.99999974E-6 : f32
    %15 = vector.broadcast %cst_4 : f32 to vector<16x1xf32>
    %16 = arith.addf %12, %15 : vector<16x1xf32>
    %17 = math.rsqrt %16 : vector<16x1xf32>
    %18 = vector.broadcast %17 : vector<16x1xf32> to vector<16x32xf32>
    %19 = arith.mulf %14, %18 : vector<16x32xf32>
    %c0_5 = arith.constant 0 : index
    %c0_6 = arith.constant 0 : index
    %20 = vector.load %arg2[%c0_5, %c0_6] : memref<1x32xf32, #tpu.memory_space<vmem>>, vector<1x32xf32>
    %21 = vector.broadcast %20 : vector<1x32xf32> to vector<16x32xf32>
    %22 = arith.mulf %19, %21 : vector<16x32xf32>
    %c0_7 = arith.constant 0 : index
    %c0_8 = arith.constant 0 : index
    %23 = vector.load %arg3[%c0_7, %c0_8] : memref<1x32xf32, #tpu.memory_space<vmem>>, vector<1x32xf32>
    %24 = vector.broadcast %23 : vector<1x32xf32> to vector<16x32xf32>
    %25 = arith.addf %22, %24 : vector<16x32xf32>
    %26 = arith.truncf %25 : vector<16x32xf32> to vector<16x32xbf16>
    %c0_9 = arith.constant 0 : index
    %c0_10 = arith.constant 0 : index
    %27 = vector.load %arg4[%c0_9, %c0_10] : memref<16x32xbf16, #tpu.memory_space<vmem>>, vector<16x32xbf16>
    tpu.vector_store %arg4[%c0_9, %c0_10], %26 {strides = array<i32>} : memref<16x32xbf16, #tpu.memory_space<vmem>>, vector<16x32xbf16>,
    return
  }
  func.func @transform_0(%arg0: i32) -> (i32, i32) {
    %c0_i32 = arith.constant 0 : i32
    %c0_i32_0 = arith.constant 0 : i32
    return %arg0, %c0_i32 : i32, i32
  }
  func.func @transform_1(%arg0: i32) -> (i32, i32) {
    %c0_i32 = arith.constant 0 : i32
    %c0_i32_0 = arith.constant 0 : i32
    %c0_i32_1 = arith.constant 0 : i32
    return %c0_i32, %c0_i32_0 : i32, i32
  }
  func.func @transform_2(%arg0: i32) -> (i32, i32) {
    %c0_i32 = arith.constant 0 : i32
    %c0_i32_0 = arith.constant 0 : i32
    %c0_i32_1 = arith.constant 0 : i32
    return %c0_i32, %c0_i32_0 : i32, i32
  }
  func.func @transform_3(%arg0: i32) -> (i32, i32) {
    %c0_i32 = arith.constant 0 : i32
    %c0_i32_0 = arith.constant 0 : i32
    return %arg0, %c0_i32 : i32, i32
  }
}

module attributes {stable_mosaic.version = 11 : i64} {
  func.func @_matmul_kernel(%arg0: i32, %arg1: i32, %arg2: i32, %arg3: memref<16x32xbf16, #tpu.memory_space<vmem>>, %arg4: memref<32x32xbf16, #tpu.memory_space<vmem>>, %arg5: memref<1x32xbf16, #tpu.memory_space<vmem>>, %arg6: memref<16x32xbf16, #tpu.memory_space<vmem>>, %arg7: memref<16x32xbf16, #tpu.memory_space<vmem>>, %arg8: memref<16x32xf32, #tpu.memory_space<vmem>>) attributes {dimension_semantics = [#tpu.dimension_semantics<parallel>, #tpu.dimension_semantics<parallel>, #tpu.dimension_semantics<arbitrary>], iteration_bounds = array<i64: 1, 1, 1>, scalar_prefetch = 0 : i64, scratch_operands = 1 : i64, tpu.core_type = #tpu.core_type<tc>, window_params = [{transform_indices = @transform_0, window_bounds = array<i64: 16, 32>}, {transform_indices = @transform_1, window_bounds = array<i64: 32, 32>}, {transform_indices = @transform_2, window_bounds = array<i64: 1, 32>}, {transform_indices = @transform_3, window_bounds = array<i64: 16, 32>}, {transform_indices = @transform_4, window_bounds = array<i64: 16, 32>}]} {
    %c0_i32 = arith.constant 0 : i32
    %0 = arith.cmpi eq, %arg2, %c0_i32 : i32
    %1 = arith.extui %0 : i1 to i32
    %c0_i32_0 = arith.constant 0 : i32
    %2 = arith.cmpi ne, %1, %c0_i32_0 : i32
    scf.if %2 {
      %cst_10 = arith.constant 0.000000e+00 : f32
      %12 = vector.broadcast %cst_10 : f32 to vector<16x32xf32>
      %c0_11 = arith.constant 0 : index
      %c0_12 = arith.constant 0 : index
      %13 = vector.load %arg8[%c0_11, %c0_12] : memref<16x32xf32, #tpu.memory_space<vmem>>, vector<16x32xf32>
      tpu.vector_store %arg8[%c0_11, %c0_12], %12 {strides = array<i32>} : memref<16x32xf32, #tpu.memory_space<vmem>>, vector<16x32xf32>,
    } else {
    }
    %c0 = arith.constant 0 : index
    %c0_1 = arith.constant 0 : index
    %3 = vector.load %arg8[%c0, %c0_1] : memref<16x32xf32, #tpu.memory_space<vmem>>, vector<16x32xf32>
    %c0_2 = arith.constant 0 : index
    %c0_3 = arith.constant 0 : index
    %4 = vector.load %arg3[%c0_2, %c0_3] : memref<16x32xbf16, #tpu.memory_space<vmem>>, vector<16x32xbf16>
    %c0_4 = arith.constant 0 : index
    %c0_5 = arith.constant 0 : index
    %5 = vector.load %arg4[%c0_4, %c0_5] : memref<32x32xbf16, #tpu.memory_space<vmem>>, vector<32x32xbf16>
    %cst = arith.constant dense<0.000000e+00> : vector<16x32xf32>
    %6 = tpu.matmul %4, %5, %cst {dimension_numbers = #tpu.dot_dimension_numbers<[1], [0], [0], [1], [0, 0, 1, 1], [], []>} : vector<16x32xbf16>, vector<32x32xbf16>, vector<16x32xf32> -> vector<16x32xf32>
    %7 = arith.addf %3, %6 : vector<16x32xf32>
    %c0_6 = arith.constant 0 : index
    %c0_7 = arith.constant 0 : index
    %8 = vector.load %arg8[%c0_6, %c0_7] : memref<16x32xf32, #tpu.memory_space<vmem>>, vector<16x32xf32>
    tpu.vector_store %arg8[%c0_6, %c0_7], %7 {strides = array<i32>} : memref<16x32xf32, #tpu.memory_space<vmem>>, vector<16x32xf32>,
    %c0_i32_8 = arith.constant 0 : i32
    %9 = arith.cmpi eq, %arg2, %c0_i32_8 : i32
    %10 = arith.extui %9 : i1 to i32
    %c0_i32_9 = arith.constant 0 : i32
    %11 = arith.cmpi ne, %10, %c0_i32_9 : i32
    scf.if %11 {
      %c0_10 = arith.constant 0 : index
      %c0_11 = arith.constant 0 : index
      %12 = vector.load %arg8[%c0_10, %c0_11] : memref<16x32xf32, #tpu.memory_space<vmem>>, vector<16x32xf32>
      %c0_12 = arith.constant 0 : index
      %c0_13 = arith.constant 0 : index
      %13 = vector.load %arg5[%c0_12, %c0_13] : memref<1x32xbf16, #tpu.memory_space<vmem>>, vector<1x32xbf16>
      %14 = arith.extf %13 : vector<1x32xbf16> to vector<1x32xf32>
      %15 = vector.broadcast %14 : vector<1x32xf32> to vector<16x32xf32>
      %16 = arith.addf %12, %15 : vector<16x32xf32>
      %c0_14 = arith.constant 0 : index
      %c0_15 = arith.constant 0 : index
      %17 = vector.load %arg6[%c0_14, %c0_15] : memref<16x32xbf16, #tpu.memory_space<vmem>>, vector<16x32xbf16>
      %18 = arith.extf %17 : vector<16x32xbf16> to vector<16x32xf32>
      %19 = arith.addf %16, %18 : vector<16x32xf32>
      %20 = arith.truncf %19 : vector<16x32xf32> to vector<16x32xbf16>
      %c0_16 = arith.constant 0 : index
      %c0_17 = arith.constant 0 : index
      %21 = vector.load %arg7[%c0_16, %c0_17] : memref<16x32xbf16, #tpu.memory_space<vmem>>, vector<16x32xbf16>
      tpu.vector_store %arg7[%c0_16, %c0_17], %20 {strides = array<i32>} : memref<16x32xbf16, #tpu.memory_space<vmem>>, vector<16x32xbf16>,
    } else {
    }
    return
  }
  func.func @transform_0(%arg0: i32, %arg1: i32, %arg2: i32) -> (i32, i32) {
    %c0_i32 = arith.constant 0 : i32
    return %arg0, %arg2 : i32, i32
  }
  func.func @transform_1(%arg0: i32, %arg1: i32, %arg2: i32) -> (i32, i32) {
    %c0_i32 = arith.constant 0 : i32
    return %arg2, %arg1 : i32, i32
  }
  func.func @transform_2(%arg0: i32, %arg1: i32, %arg2: i32) -> (i32, i32) {
    %c0_i32 = arith.constant 0 : i32
    %c0_i32_0 = arith.constant 0 : i32
    return %c0_i32, %arg1 : i32, i32
  }
  func.func @transform_3(%arg0: i32, %arg1: i32, %arg2: i32) -> (i32, i32) {
    %c0_i32 = arith.constant 0 : i32
    return %arg0, %arg1 : i32, i32
  }
  func.func @transform_4(%arg0: i32, %arg1: i32, %arg2: i32) -> (i32, i32) {
    %c0_i32 = arith.constant 0 : i32
    return %arg0, %arg1 : i32, i32
  }
}

module attributes {stable_mosaic.version = 11 : i64} {
  func.func @_matmul_kernel(%arg0: i32, %arg1: i32, %arg2: i32, %arg3: memref<16x32xbf16, #tpu.memory_space<vmem>>, %arg4: memref<32x128xbf16, #tpu.memory_space<vmem>>, %arg5: memref<1x128xbf16, #tpu.memory_space<vmem>>, %arg6: memref<16x128xbf16, #tpu.memory_space<vmem>>, %arg7: memref<16x128xf32, #tpu.memory_space<vmem>>) attributes {dimension_semantics = [#tpu.dimension_semantics<parallel>, #tpu.dimension_semantics<parallel>, #tpu.dimension_semantics<arbitrary>], iteration_bounds = array<i64: 1, 1, 1>, scalar_prefetch = 0 : i64, scratch_operands = 1 : i64, tpu.core_type = #tpu.core_type<tc>, window_params = [{transform_indices = @transform_0, window_bounds = array<i64: 16, 32>}, {transform_indices = @transform_1, window_bounds = array<i64: 32, 128>}, {transform_indices = @transform_2, window_bounds = array<i64: 1, 128>}, {transform_indices = @transform_3, window_bounds = array<i64: 16, 128>}]} {
    %c0_i32 = arith.constant 0 : i32
    %0 = arith.cmpi eq, %arg2, %c0_i32 : i32
    %1 = arith.extui %0 : i1 to i32
    %c0_i32_0 = arith.constant 0 : i32
    %2 = arith.cmpi ne, %1, %c0_i32_0 : i32
    scf.if %2 {
      %cst_10 = arith.constant 0.000000e+00 : f32
      %12 = vector.broadcast %cst_10 : f32 to vector<16x128xf32>
      %c0_11 = arith.constant 0 : index
      %c0_12 = arith.constant 0 : index
      %13 = vector.load %arg7[%c0_11, %c0_12] : memref<16x128xf32, #tpu.memory_space<vmem>>, vector<16x128xf32>
      tpu.vector_store %arg7[%c0_11, %c0_12], %12 {strides = array<i32>} : memref<16x128xf32, #tpu.memory_space<vmem>>, vector<16x128xf32>,
    } else {
    }
    %c0 = arith.constant 0 : index
    %c0_1 = arith.constant 0 : index
    %3 = vector.load %arg7[%c0, %c0_1] : memref<16x128xf32, #tpu.memory_space<vmem>>, vector<16x128xf32>
    %c0_2 = arith.constant 0 : index
    %c0_3 = arith.constant 0 : index
    %4 = vector.load %arg3[%c0_2, %c0_3] : memref<16x32xbf16, #tpu.memory_space<vmem>>, vector<16x32xbf16>
    %c0_4 = arith.constant 0 : index
    %c0_5 = arith.constant 0 : index
    %5 = vector.load %arg4[%c0_4, %c0_5] : memref<32x128xbf16, #tpu.memory_space<vmem>>, vector<32x128xbf16>
    %cst = arith.constant dense<0.000000e+00> : vector<16x128xf32>
    %6 = tpu.matmul %4, %5, %cst {dimension_numbers = #tpu.dot_dimension_numbers<[1], [0], [0], [1], [0, 0, 1, 1], [], []>} : vector<16x32xbf16>, vector<32x128xbf16>, vector<16x128xf32> -> vector<16x128xf32>
    %7 = arith.addf %3, %6 : vector<16x128xf32>
    %c0_6 = arith.constant 0 : index
    %c0_7 = arith.constant 0 : index
    %8 = vector.load %arg7[%c0_6, %c0_7] : memref<16x128xf32, #tpu.memory_space<vmem>>, vector<16x128xf32>
    tpu.vector_store %arg7[%c0_6, %c0_7], %7 {strides = array<i32>} : memref<16x128xf32, #tpu.memory_space<vmem>>, vector<16x128xf32>,
    %c0_i32_8 = arith.constant 0 : i32
    %9 = arith.cmpi eq, %arg2, %c0_i32_8 : i32
    %10 = arith.extui %9 : i1 to i32
    %c0_i32_9 = arith.constant 0 : i32
    %11 = arith.cmpi ne, %10, %c0_i32_9 : i32
    scf.if %11 {
      %c0_10 = arith.constant 0 : index
      %c0_11 = arith.constant 0 : index
      %12 = vector.load %arg7[%c0_10, %c0_11] : memref<16x128xf32, #tpu.memory_space<vmem>>, vector<16x128xf32>
      %c0_12 = arith.constant 0 : index
      %c0_13 = arith.constant 0 : index
      %13 = vector.load %arg5[%c0_12, %c0_13] : memref<1x128xbf16, #tpu.memory_space<vmem>>, vector<1x128xbf16>
      %14 = arith.extf %13 : vector<1x128xbf16> to vector<1x128xf32>
      %15 = vector.broadcast %14 : vector<1x128xf32> to vector<16x128xf32>
      %16 = arith.addf %12, %15 : vector<16x128xf32>
      %17 = arith.mulf %16, %16 : vector<16x128xf32>
      %18 = arith.mulf %16, %17 : vector<16x128xf32>
      %cst_14 = arith.constant 4.471500e-02 : f32
      %19 = vector.broadcast %cst_14 : f32 to vector<16x128xf32>
      %20 = arith.mulf %19, %18 : vector<16x128xf32>
      %21 = arith.addf %16, %20 : vector<16x128xf32>
      %cst_15 = arith.constant 0.797884583 : f32
      %22 = vector.broadcast %cst_15 : f32 to vector<16x128xf32>
      %23 = arith.mulf %22, %21 : vector<16x128xf32>
      %24 = math.tanh %23 : vector<16x128xf32>
      %cst_16 = arith.constant 1.000000e+00 : f32
      %25 = vector.broadcast %cst_16 : f32 to vector<16x128xf32>
      %26 = arith.addf %25, %24 : vector<16x128xf32>
      %cst_17 = arith.constant 5.000000e-01 : f32
      %27 = vector.broadcast %cst_17 : f32 to vector<16x128xf32>
      %28 = arith.mulf %27, %26 : vector<16x128xf32>
      %29 = arith.mulf %16, %28 : vector<16x128xf32>
      %30 = arith.truncf %29 : vector<16x128xf32> to vector<16x128xbf16>
      %c0_18 = arith.constant 0 : index
      %c0_19 = arith.constant 0 : index
      %31 = vector.load %arg6[%c0_18, %c0_19] : memref<16x128xbf16, #tpu.memory_space<vmem>>, vector<16x128xbf16>
      tpu.vector_store %arg6[%c0_18, %c0_19], %30 {strides = array<i32>} : memref<16x128xbf16, #tpu.memory_space<vmem>>, vector<16x128xbf16>,
    } else {
    }
    return
  }
  func.func @transform_0(%arg0: i32, %arg1: i32, %arg2: i32) -> (i32, i32) {
    %c0_i32 = arith.constant 0 : i32
    return %arg0, %arg2 : i32, i32
  }
  func.func @transform_1(%arg0: i32, %arg1: i32, %arg2: i32) -> (i32, i32) {
    %c0_i32 = arith.constant 0 : i32
    return %arg2, %arg1 : i32, i32
  }
  func.func @transform_2(%arg0: i32, %arg1: i32, %arg2: i32) -> (i32, i32) {
    %c0_i32 = arith.constant 0 : i32
    %c0_i32_0 = arith.constant 0 : i32
    return %c0_i32, %arg1 : i32, i32
  }
  func.func @transform_3(%arg0: i32, %arg1: i32, %arg2: i32) -> (i32, i32) {
    %c0_i32 = arith.constant 0 : i32
    return %arg0, %arg1 : i32, i32
  }
}

module attributes {stable_mosaic.version = 11 : i64} {
  func.func @_attention_kernel(%arg0: i32, %arg1: memref<2xi32, #tpu.memory_space<smem>>, %arg2: memref<1x8x32xbf16, #tpu.memory_space<vmem>>, %arg3: memref<1x8x32xbf16, #tpu.memory_space<vmem>>, %arg4: memref<1x8x32xbf16, #tpu.memory_space<vmem>>, %arg5: memref<1x8x32xbf16, #tpu.memory_space<vmem>>) attributes {dimension_semantics = [#tpu.dimension_semantics<parallel>], iteration_bounds = array<i64: 2>, scalar_prefetch = 1 : i64, scratch_operands = 0 : i64, tpu.core_type = #tpu.core_type<tc>, window_params = [{transform_indices = @transform_0, window_bounds = array<i64: 1, 8, 32>}, {transform_indices = @transform_1, window_bounds = array<i64: 1, 8, 32>}, {transform_indices = @transform_2, window_bounds = array<i64: 1, 8, 32>}, {transform_indices = @transform_3, window_bounds = array<i64: 1, 8, 32>}]} {
    %0 = arith.index_cast %arg0 : i32 to index
    %1 = memref.load %arg1[%0] : memref<2xi32, #tpu.memory_space<smem>>
    %c0 = arith.constant 0 : index
    %c0_0 = arith.constant 0 : index
    %c0_1 = arith.constant 0 : index
    %2 = vector.load %arg2[%c0, %c0_0, %c0_1] : memref<1x8x32xbf16, #tpu.memory_space<vmem>>, vector<1x8x32xbf16>
    %3 = vector.shape_cast %2 : vector<1x8x32xbf16> to vector<8x32xbf16>
    %4 = arith.extf %3 : vector<8x32xbf16> to vector<8x32xf32>
    %cst = arith.constant 0.353553385 : f32
    %5 = vector.broadcast %cst : f32 to vector<8x32xf32>
    %6 = arith.mulf %4, %5 : vector<8x32xf32>
    %7 = arith.truncf %6 : vector<8x32xf32> to vector<8x32xbf16>
    %c0_2 = arith.constant 0 : index
    %c0_3 = arith.constant 0 : index
    %c0_4 = arith.constant 0 : index
    %8 = vector.load %arg3[%c0_2, %c0_3, %c0_4] : memref<1x8x32xbf16, #tpu.memory_space<vmem>>, vector<1x8x32xbf16>
    %9 = vector.shape_cast %8 : vector<1x8x32xbf16> to vector<8x32xbf16>
    %c0_5 = arith.constant 0 : index
    %c0_6 = arith.constant 0 : index
    %c0_7 = arith.constant 0 : index
    %10 = vector.load %arg4[%c0_5, %c0_6, %c0_7] : memref<1x8x32xbf16, #tpu.memory_space<vmem>>, vector<1x8x32xbf16>
    %11 = vector.shape_cast %10 : vector<1x8x32xbf16> to vector<8x32xbf16>
    %12 = tpu.iota {dimensions = array<i32: 0>} : vector<8x8xi32>
    %13 = tpu.iota {dimensions = array<i32: 1>} : vector<8x8xi32>
    %14 = vector.broadcast %1 : i32 to vector<8x8xi32>
    %15 = arith.addi %12, %14 : vector<8x8xi32>
    %16 = arith.cmpi sle, %13, %15 : vector<8x8xi32>
    %17 = vector.extract_strided_slice %7 {offsets = [0, 0], sizes = [8, 8], strides = [1, 1]} : vector<8x32xbf16> to vector<8x8xbf16>
    %18 = vector.extract_strided_slice %9 {offsets = [0, 0], sizes = [8, 8], strides = [1, 1]} : vector<8x32xbf16> to vector<8x8xbf16>
    %cst_8 = arith.constant dense<0.000000e+00> : vector<8x8xf32>
    %19 = tpu.matmul %17, %18, %cst_8 {dimension_numbers = #tpu.dot_dimension_numbers<[1], [1], [0], [0], [0, 0, 1, 0], [], []>} : vector<8x8xbf16>, vector<8x8xbf16>, vector<8x8xf32> -> vector<8x8xf32>
    %cst_9 = arith.constant 0xFF800000 : f32
    %20 = vector.broadcast %cst_9 : f32 to vector<8x8xf32>
    %21 = arith.select %16, %19, %20 : vector<8x8xi1>, vector<8x8xf32>
    %cst_10 = arith.constant dense<0xFF800000> : vector<8xf32>
    %22 = vector.multi_reduction <maximumf>, %21, %cst_10 [1] : vector<8x8xf32> to vector<8xf32>
    %23 = vector.shape_cast %22 : vector<8xf32> to vector<8x1xf32>
    %24 = vector.broadcast %23 : vector<8x1xf32> to vector<8x8xf32>
    %25 = arith.subf %21, %24 : vector<8x8xf32>
    %26 = math.exp %25 : vector<8x8xf32>
    %cst_11 = arith.constant dense<0.000000e+00> : vector<8xf32>
    %27 = vector.multi_reduction <add>, %26, %cst_11 [1] : vector<8x8xf32> to vector<8xf32>
    %28 = vector.shape_cast %27 : vector<8xf32> to vector<8x1xf32>
    %29 = tpu.reciprocal %28 {approx = true} : vector<8x1xf32> -> vector<8x1xf32>
    %30 = vector.broadcast %29 : vector<8x1xf32> to vector<8x8xf32>
    %31 = arith.mulf %26, %30 : vector<8x8xf32>
    %32 = arith.truncf %31 : vector<8x8xf32> to vector<8x8xbf16>
    %33 = vector.extract_strided_slice %11 {offsets = [0, 0], sizes = [8, 8], strides = [1, 1]} : vector<8x32xbf16> to vector<8x8xbf16>
    %cst_12 = arith.constant dense<0.000000e+00> : vector<8x8xf32>
    %34 = tpu.matmul %32, %33, %cst_12 {dimension_numbers = #tpu.dot_dimension_numbers<[1], [0], [0], [1], [0, 0, 1, 1], [], []>} : vector<8x8xbf16>, vector<8x8xbf16>, vector<8x8xf32> -> vector<8x8xf32>
    %35 = arith.truncf %34 : vector<8x8xf32> to vector<8x8xbf16>
    %c0_13 = arith.constant 0 : index
    %c0_14 = arith.constant 0 : index
    %c0_15 = arith.constant 0 : index
    %36 = vector.load %arg5[%c0_13, %c0_14, %c0_15] : memref<1x8x32xbf16, #tpu.memory_space<vmem>>, vector<1x8x8xbf16>
    %37 = vector.shape_cast %36 : vector<1x8x8xbf16> to vector<8x8xbf16>
    %38 = vector.shape_cast %35 : vector<8x8xbf16> to vector<1x8x8xbf16>
    tpu.vector_store %arg5[%c0_13, %c0_14, %c0_15], %38 {strides = array<i32>} : memref<1x8x32xbf16, #tpu.memory_space<vmem>>, vector<1x8x8xbf16>,
    %39 = vector.extract_strided_slice %7 {offsets = [0, 8], sizes = [8, 8], strides = [1, 1]} : vector<8x32xbf16> to vector<8x8xbf16>
    %40 = vector.extract_strided_slice %9 {offsets = [0, 8], sizes = [8, 8], strides = [1, 1]} : vector<8x32xbf16> to vector<8x8xbf16>
    %cst_16 = arith.constant dense<0.000000e+00> : vector<8x8xf32>
    %41 = tpu.matmul %39, %40, %cst_16 {dimension_numbers = #tpu.dot_dimension_numbers<[1], [1], [0], [0], [0, 0, 1, 0], [], []>} : vector<8x8xbf16>, vector<8x8xbf16>, vector<8x8xf32> -> vector<8x8xf32>
    %cst_17 = arith.constant 0xFF800000 : f32
    %42 = vector.broadcast %cst_17 : f32 to vector<8x8xf32>
    %43 = arith.select %16, %41, %42 : vector<8x8xi1>, vector<8x8xf32>
    %cst_18 = arith.constant dense<0xFF800000> : vector<8xf32>
    %44 = vector.multi_reduction <maximumf>, %43, %cst_18 [1] : vector<8x8xf32> to vector<8xf32>
    %45 = vector.shape_cast %44 : vector<8xf32> to vector<8x1xf32>
    %46 = vector.broadcast %45 : vector<8x1xf32> to vector<8x8xf32>
    %47 = arith.subf %43, %46 : vector<8x8xf32>
    %48 = math.exp %47 : vector<8x8xf32>
    %cst_19 = arith.constant dense<0.000000e+00> : vector<8xf32>
    %49 = vector.multi_reduction <add>, %48, %cst_19 [1] : vector<8x8xf32> to vector<8xf32>
    %50 = vector.shape_cast %49 : vector<8xf32> to vector<8x1xf32>
    %51 = tpu.reciprocal %50 {approx = true} : vector<8x1xf32> -> vector<8x1xf32>
    %52 = vector.broadcast %51 : vector<8x1xf32> to vector<8x8xf32>
    %53 = arith.mulf %48, %52 : vector<8x8xf32>
    %54 = arith.truncf %53 : vector<8x8xf32> to vector<8x8xbf16>
    %55 = vector.extract_strided_slice %11 {offsets = [0, 8], sizes = [8, 8], strides = [1, 1]} : vector<8x32xbf16> to vector<8x8xbf16>
    %cst_20 = arith.constant dense<0.000000e+00> : vector<8x8xf32>
    %56 = tpu.matmul %54, %55, %cst_20 {dimension_numbers = #tpu.dot_dimension_numbers<[1], [0], [0], [1], [0, 0, 1, 1], [], []>} : vector<8x8xbf16>, vector<8x8xbf16>, vector<8x8xf32> -> vector<8x8xf32>
    %57 = arith.truncf %56 : vector<8x8xf32> to vector<8x8xbf16>
    %c0_21 = arith.constant 0 : index
    %c0_22 = arith.constant 0 : index
    %c8 = arith.constant 8 : index
    %58 = vector.load %arg5[%c0_21, %c0_22, %c8] : memref<1x8x32xbf16, #tpu.memory_space<vmem>>, vector<1x8x8xbf16>
    %59 = vector.shape_cast %58 : vector<1x8x8xbf16> to vector<8x8xbf16>
    %60 = vector.shape_cast %57 : vector<8x8xbf16> to vector<1x8x8xbf16>
    tpu.vector_store %arg5[%c0_21, %c0_22, %c8], %60 {strides = array<i32>} : memref<1x8x32xbf16, #tpu.memory_space<vmem>>, vector<1x8x8xbf16>,
    %61 = vector.extract_strided_slice %7 {offsets = [0, 16], sizes = [8, 8], strides = [1, 1]} : vector<8x32xbf16> to vector<8x8xbf16>
    %62 = vector.extract_strided_slice %9 {offsets = [0, 16], sizes = [8, 8], strides = [1, 1]} : vector<8x32xbf16> to vector<8x8xbf16>
    %cst_23 = arith.constant dense<0.000000e+00> : vector<8x8xf32>
    %63 = tpu.matmul %61, %62, %cst_23 {dimension_numbers = #tpu.dot_dimension_numbers<[1], [1], [0], [0], [0, 0, 1, 0], [], []>} : vector<8x8xbf16>, vector<8x8xbf16>, vector<8x8xf32> -> vector<8x8xf32>
    %cst_24 = arith.constant 0xFF800000 : f32
    %64 = vector.broadcast %cst_24 : f32 to vector<8x8xf32>
    %65 = arith.select %16, %63, %64 : vector<8x8xi1>, vector<8x8xf32>
    %cst_25 = arith.constant dense<0xFF800000> : vector<8xf32>
    %66 = vector.multi_reduction <maximumf>, %65, %cst_25 [1] : vector<8x8xf32> to vector<8xf32>
    %67 = vector.shape_cast %66 : vector<8xf32> to vector<8x1xf32>
    %68 = vector.broadcast %67 : vector<8x1xf32> to vector<8x8xf32>
    %69 = arith.subf %65, %68 : vector<8x8xf32>
    %70 = math.exp %69 : vector<8x8xf32>
    %cst_26 = arith.constant dense<0.000000e+00> : vector<8xf32>
    %71 = vector.multi_reduction <add>, %70, %cst_26 [1] : vector<8x8xf32> to vector<8xf32>
    %72 = vector.shape_cast %71 : vector<8xf32> to vector<8x1xf32>
    %73 = tpu.reciprocal %72 {approx = true} : vector<8x1xf32> -> vector<8x1xf32>
    %74 = vector.broadcast %73 : vector<8x1xf32> to vector<8x8xf32>
    %75 = arith.mulf %70, %74 : vector<8x8xf32>
    %76 = arith.truncf %75 : vector<8x8xf32> to vector<8x8xbf16>
    %77 = vector.extract_strided_slice %11 {offsets = [0, 16], sizes = [8, 8], strides = [1, 1]} : vector<8x32xbf16> to vector<8x8xbf16>
    %cst_27 = arith.constant dense<0.000000e+00> : vector<8x8xf32>
    %78 = tpu.matmul %76, %77, %cst_27 {dimension_numbers = #tpu.dot_dimension_numbers<[1], [0], [0], [1], [0, 0, 1, 1], [], []>} : vector<8x8xbf16>, vector<8x8xbf16>, vector<8x8xf32> -> vector<8x8xf32>
    %79 = arith.truncf %78 : vector<8x8xf32> to vector<8x8xbf16>
    %c0_28 = arith.constant 0 : index
    %c0_29 = arith.constant 0 : index
    %c16 = arith.constant 16 : index
    %80 = vector.load %arg5[%c0_28, %c0_29, %c16] : memref<1x8x32xbf16, #tpu.memory_space<vmem>>, vector<1x8x8xbf16>
    %81 = vector.shape_cast %80 : vector<1x8x8xbf16> to vector<8x8xbf16>
    %82 = vector.shape_cast %79 : vector<8x8xbf16> to vector<1x8x8xbf16>
    tpu.vector_store %arg5[%c0_28, %c0_29, %c16], %82 {strides = array<i32>} : memref<1x8x32xbf16, #tpu.memory_space<vmem>>, vector<1x8x8xbf16>,
    %83 = vector.extract_strided_slice %7 {offsets = [0, 24], sizes = [8, 8], strides = [1, 1]} : vector<8x32xbf16> to vector<8x8xbf16>
    %84 = vector.extract_strided_slice %9 {offsets = [0, 24], sizes = [8, 8], strides = [1, 1]} : vector<8x32xbf16> to vector<8x8xbf16>
    %cst_30 = arith.constant dense<0.000000e+00> : vector<8x8xf32>
    %85 = tpu.matmul %83, %84, %cst_30 {dimension_numbers = #tpu.dot_dimension_numbers<[1], [1], [0], [0], [0, 0, 1, 0], [], []>} : vector<8x8xbf16>, vector<8x8xbf16>, vector<8x8xf32> -> vector<8x8xf32>
    %cst_31 = arith.constant 0xFF800000 : f32
    %86 = vector.broadcast %cst_31 : f32 to vector<8x8xf32>
    %87 = arith.select %16, %85, %86 : vector<8x8xi1>, vector<8x8xf32>
    %cst_32 = arith.constant dense<0xFF800000> : vector<8xf32>
    %88 = vector.multi_reduction <maximumf>, %87, %cst_32 [1] : vector<8x8xf32> to vector<8xf32>
    %89 = vector.shape_cast %88 : vector<8xf32> to vector<8x1xf32>
    %90 = vector.broadcast %89 : vector<8x1xf32> to vector<8x8xf32>
    %91 = arith.subf %87, %90 : vector<8x8xf32>
    %92 = math.exp %91 : vector<8x8xf32>
    %cst_33 = arith.constant dense<0.000000e+00> : vector<8xf32>
    %93 = vector.multi_reduction <add>, %92, %cst_33 [1] : vector<8x8xf32> to vector<8xf32>
    %94 = vector.shape_cast %93 : vector<8xf32> to vector<8x1xf32>
    %95 = tpu.reciprocal %94 {approx = true} : vector<8x1xf32> -> vector<8x1xf32>
    %96 = vector.broadcast %95 : vector<8x1xf32> to vector<8x8xf32>
    %97 = arith.mulf %92, %96 : vector<8x8xf32>
    %98 = arith.truncf %97 : vector<8x8xf32> to vector<8x8xbf16>
    %99 = vector.extract_strided_slice %11 {offsets = [0, 24], sizes = [8, 8], strides = [1, 1]} : vector<8x32xbf16> to vector<8x8xbf16>
    %cst_34 = arith.constant dense<0.000000e+00> : vector<8x8xf32>
    %100 = tpu.matmul %98, %99, %cst_34 {dimension_numbers = #tpu.dot_dimension_numbers<[1], [0], [0], [1], [0, 0, 1, 1], [], []>} : vector<8x8xbf16>, vector<8x8xbf16>, vector<8x8xf32> -> vector<8x8xf32>
    %101 = arith.truncf %100 : vector<8x8xf32> to vector<8x8xbf16>
    %c0_35 = arith.constant 0 : index
    %c0_36 = arith.constant 0 : index
    %c24 = arith.constant 24 : index
    %102 = vector.load %arg5[%c0_35, %c0_36, %c24] : memref<1x8x32xbf16, #tpu.memory_space<vmem>>, vector<1x8x8xbf16>
    %103 = vector.shape_cast %102 : vector<1x8x8xbf16> to vector<8x8xbf16>
    %104 = vector.shape_cast %101 : vector<8x8xbf16> to vector<1x8x8xbf16>
    tpu.vector_store %arg5[%c0_35, %c0_36, %c24], %104 {strides = array<i32>} : memref<1x8x32xbf16, #tpu.memory_space<vmem>>, vector<1x8x8xbf16>,
    return
  }
  func.func @transform_0(%arg0: i32, %arg1: memref<2xi32, #tpu.memory_space<smem>>) -> (i32, i32, i32) {
    %c0_i32 = arith.constant 0 : i32
    %c0_i32_0 = arith.constant 0 : i32
    %c0_i32_1 = arith.constant 0 : i32
    return %arg0, %c0_i32, %c0_i32_0 : i32, i32, i32
  }
  func.func @transform_1(%arg0: i32, %arg1: memref<2xi32, #tpu.memory_space<smem>>) -> (i32, i32, i32) {
    %c0_i32 = arith.constant 0 : i32
    %c0_i32_0 = arith.constant 0 : i32
    %c0_i32_1 = arith.constant 0 : i32
    return %arg0, %c0_i32, %c0_i32_0 : i32, i32, i32
  }
  func.func @transform_2(%arg0: i32, %arg1: memref<2xi32, #tpu.memory_space<smem>>) -> (i32, i32, i32) {
    %c0_i32 = arith.constant 0 : i32
    %c0_i32_0 = arith.constant 0 : i32
    %c0_i32_1 = arith.constant 0 : i32
    return %arg0, %c0_i32, %c0_i32_0 : i32, i32, i32
  }
  func.func @transform_3(%arg0: i32, %arg1: memref<2xi32, #tpu.memory_space<smem>>) -> (i32, i32, i32) {
    %c0_i32 = arith.constant 0 : i32
    %c0_i32_0 = arith.constant 0 : i32
    %c0_i32_1 = arith.constant 0 : i32
    return %arg0, %c0_i32, %c0_i32_0 : i32, i32, i32
  }
}

module attributes {stable_mosaic.version = 11 : i64} {
  func.func @_matmul_kernel(%arg0: i32, %arg1: i32, %arg2: i32, %arg3: memref<16x128xbf16, #tpu.memory_space<vmem>>, %arg4: memref<128x32xbf16, #tpu.memory_space<vmem>>, %arg5: memref<1x32xbf16, #tpu.memory_space<vmem>>, %arg6: memref<16x32xbf16, #tpu.memory_space<vmem>>, %arg7: memref<16x32xbf16, #tpu.memory_space<vmem>>, %arg8: memref<16x32xf32, #tpu.memory_space<vmem>>) attributes {dimension_semantics = [#tpu.dimension_semantics<parallel>, #tpu.dimension_semantics<parallel>, #tpu.dimension_semantics<arbitrary>], iteration_bounds = array<i64: 1, 1, 1>, scalar_prefetch = 0 : i64, scratch_operands = 1 : i64, tpu.core_type = #tpu.core_type<tc>, window_params = [{transform_indices = @transform_0, window_bounds = array<i64: 16, 128>}, {transform_indices = @transform_1, window_bounds = array<i64: 128, 32>}, {transform_indices = @transform_2, window_bounds = array<i64: 1, 32>}, {transform_indices = @transform_3, window_bounds = array<i64: 16, 32>}, {transform_indices = @transform_4, window_bounds = array<i64: 16, 32>}]} {
    %c0_i32 = arith.constant 0 : i32
    %0 = arith.cmpi eq, %arg2, %c0_i32 : i32
    %1 = arith.extui %0 : i1 to i32
    %c0_i32_0 = arith.constant 0 : i32
    %2 = arith.cmpi ne, %1, %c0_i32_0 : i32
    scf.if %2 {
      %cst_10 = arith.constant 0.000000e+00 : f32
      %12 = vector.broadcast %cst_10 : f32 to vector<16x32xf32>
      %c0_11 = arith.constant 0 : index
      %c0_12 = arith.constant 0 : index
      %13 = vector.load %arg8[%c0_11, %c0_12] : memref<16x32xf32, #tpu.memory_space<vmem>>, vector<16x32xf32>
      tpu.vector_store %arg8[%c0_11, %c0_12], %12 {strides = array<i32>} : memref<16x32xf32, #tpu.memory_space<vmem>>, vector<16x32xf32>,
    } else {
    }
    %c0 = arith.constant 0 : index
    %c0_1 = arith.constant 0 : index
    %3 = vector.load %arg8[%c0, %c0_1] : memref<16x32xf32, #tpu.memory_space<vmem>>, vector<16x32xf32>
    %c0_2 = arith.constant 0 : index
    %c0_3 = arith.constant 0 : index
    %4 = vector.load %arg3[%c0_2, %c0_3] : memref<16x128xbf16, #tpu.memory_space<vmem>>, vector<16x128xbf16>
    %c0_4 = arith.constant 0 : index
    %c0_5 = arith.constant 0 : index
    %5 = vector.load %arg4[%c0_4, %c0_5] : memref<128x32xbf16, #tpu.memory_space<vmem>>, vector<128x32xbf16>
    %cst = arith.constant dense<0.000000e+00> : vector<16x32xf32>
    %6 = tpu.matmul %4, %5, %cst {dimension_numbers = #tpu.dot_dimension_numbers<[1], [0], [0], [1], [0, 0, 1, 1], [], []>} : vector<16x128xbf16>, vector<128x32xbf16>, vector<16x32xf32> -> vector<16x32xf32>
    %7 = arith.addf %3, %6 : vector<16x32xf32>
    %c0_6 = arith.constant 0 : index
    %c0_7 = arith.constant 0 : index
    %8 = vector.load %arg8[%c0_6, %c0_7] : memref<16x32xf32, #tpu.memory_space<vmem>>, vector<16x32xf32>
    tpu.vector_store %arg8[%c0_6, %c0_7], %7 {strides = array<i32>} : memref<16x32xf32, #tpu.memory_space<vmem>>, vector<16x32xf32>,
    %c0_i32_8 = arith.constant 0 : i32
    %9 = arith.cmpi eq, %arg2, %c0_i32_8 : i32
    %10 = arith.extui %9 : i1 to i32
    %c0_i32_9 = arith.constant 0 : i32
    %11 = arith.cmpi ne, %10, %c0_i32_9 : i32
    scf.if %11 {
      %c0_10 = arith.constant 0 : index
      %c0_11 = arith.constant 0 : index
      %12 = vector.load %arg8[%c0_10, %c0_11] : memref<16x32xf32, #tpu.memory_space<vmem>>, vector<16x32xf32>
      %c0_12 = arith.constant 0 : index
      %c0_13 = arith.constant 0 : index
      %13 = vector.load %arg5[%c0_12, %c0_13] : memref<1x32xbf16, #tpu.memory_space<vmem>>, vector<1x32xbf16>
      %14 = arith.extf %13 : vector<1x32xbf16> to vector<1x32xf32>
      %15 = vector.broadcast %14 : vector<1x32xf32> to vector<16x32xf32>
      %16 = arith.addf %12, %15 : vector<16x32xf32>
      %c0_14 = arith.constant 0 : index
      %c0_15 = arith.constant 0 : index
      %17 = vector.load %arg6[%c0_14, %c0_15] : memref<16x32xbf16, #tpu.memory_space<vmem>>, vector<16x32xbf16>
      %18 = arith.extf %17 : vector<16x32xbf16> to vector<16x32xf32>
      %19 = arith.addf %16, %18 : vector<16x32xf32>
      %20 = arith.truncf %19 : vector<16x32xf32> to vector<16x32xbf16>
      %c0_16 = arith.constant 0 : index
      %c0_17 = arith.constant 0 : index
      %21 = vector.load %arg7[%c0_16, %c0_17] : memref<16x32xbf16, #tpu.memory_space<vmem>>, vector<16x32xbf16>
      tpu.vector_store %arg7[%c0_16, %c0_17], %20 {strides = array<i32>} : memref<16x32xbf16, #tpu.memory_space<vmem>>, vector<16x32xbf16>,
    } else {
    }
    return
  }
  func.func @transform_0(%arg0: i32, %arg1: i32, %arg2: i32) -> (i32, i32) {
    %c0_i32 = arith.constant 0 : i32
    return %arg0, %arg2 : i32, i32
  }
  func.func @transform_1(%arg0: i32, %arg1: i32, %arg2: i32) -> (i32, i32) {
    %c0_i32 = arith.constant 0 : i32
    return %arg2, %arg1 : i32, i32
  }
  func.func @transform_2(%arg0: i32, %arg1: i32, %arg2: i32) -> (i32, i32) {
    %c0_i32 = arith.constant 0 : i32
    %c0_i32_0 = arith.constant 0 : i32
    return %c0_i32, %arg1 : i32, i32
  }
  func.func @transform_3(%arg0: i32, %arg1: i32, %arg2: i32) -> (i32, i32) {
    %c0_i32 = arith.constant 0 : i32
    return %arg0, %arg1 : i32, i32
  }
  func.func @transform_4(%arg0: i32, %arg1: i32, %arg2: i32) -> (i32, i32) {
    %c0_i32 = arith.constant 0 : i32
    return %arg0, %arg1 : i32, i32
  }
}

module attributes {stable_mosaic.version = 11 : i64} {
  func.func @_matmul_kernel(%arg0: i32, %arg1: i32, %arg2: i32, %arg3: memref<8x32xbf16, #tpu.memory_space<vmem>>, %arg4: memref<32x256xbf16, #tpu.memory_space<vmem>>, %arg5: memref<1x256xbf16, #tpu.memory_space<vmem>>, %arg6: memref<8x256xf32, #tpu.memory_space<vmem>>, %arg7: memref<8x256xf32, #tpu.memory_space<vmem>>) attributes {dimension_semantics = [#tpu.dimension_semantics<parallel>, #tpu.dimension_semantics<parallel>, #tpu.dimension_semantics<arbitrary>], iteration_bounds = array<i64: 1, 1, 1>, scalar_prefetch = 0 : i64, scratch_operands = 1 : i64, tpu.core_type = #tpu.core_type<tc>, window_params = [{transform_indices = @transform_0, window_bounds = array<i64: 8, 32>}, {transform_indices = @transform_1, window_bounds = array<i64: 32, 256>}, {transform_indices = @transform_2, window_bounds = array<i64: 1, 256>}, {transform_indices = @transform_3, window_bounds = array<i64: 8, 256>}]} {
    %c0_i32 = arith.constant 0 : i32
    %0 = arith.cmpi eq, %arg2, %c0_i32 : i32
    %1 = arith.extui %0 : i1 to i32
    %c0_i32_0 = arith.constant 0 : i32
    %2 = arith.cmpi ne, %1, %c0_i32_0 : i32
    scf.if %2 {
      %cst_10 = arith.constant 0.000000e+00 : f32
      %12 = vector.broadcast %cst_10 : f32 to vector<8x256xf32>
      %c0_11 = arith.constant 0 : index
      %c0_12 = arith.constant 0 : index
      %13 = vector.load %arg7[%c0_11, %c0_12] : memref<8x256xf32, #tpu.memory_space<vmem>>, vector<8x256xf32>
      tpu.vector_store %arg7[%c0_11, %c0_12], %12 {strides = array<i32>} : memref<8x256xf32, #tpu.memory_space<vmem>>, vector<8x256xf32>,
    } else {
    }
    %c0 = arith.constant 0 : index
    %c0_1 = arith.constant 0 : index
    %3 = vector.load %arg7[%c0, %c0_1] : memref<8x256xf32, #tpu.memory_space<vmem>>, vector<8x256xf32>
    %c0_2 = arith.constant 0 : index
    %c0_3 = arith.constant 0 : index
    %4 = vector.load %arg3[%c0_2, %c0_3] : memref<8x32xbf16, #tpu.memory_space<vmem>>, vector<8x32xbf16>
    %c0_4 = arith.constant 0 : index
    %c0_5 = arith.constant 0 : index
    %5 = vector.load %arg4[%c0_4, %c0_5] : memref<32x256xbf16, #tpu.memory_space<vmem>>, vector<32x256xbf16>
    %cst = arith.constant dense<0.000000e+00> : vector<8x256xf32>
    %6 = tpu.matmul %4, %5, %cst {dimension_numbers = #tpu.dot_dimension_numbers<[1], [0], [0], [1], [0, 0, 1, 1], [], []>} : vector<8x32xbf16>, vector<32x256xbf16>, vector<8x256xf32> -> vector<8x256xf32>
    %7 = arith.addf %3, %6 : vector<8x256xf32>
    %c0_6 = arith.constant 0 : index
    %c0_7 = arith.constant 0 : index
    %8 = vector.load %arg7[%c0_6, %c0_7] : memref<8x256xf32, #tpu.memory_space<vmem>>, vector<8x256xf32>
    tpu.vector_store %arg7[%c0_6, %c0_7], %7 {strides = array<i32>} : memref<8x256xf32, #tpu.memory_space<vmem>>, vector<8x256xf32>,
    %c0_i32_8 = arith.constant 0 : i32
    %9 = arith.cmpi eq, %arg2, %c0_i32_8 : i32
    %10 = arith.extui %9 : i1 to i32
    %c0_i32_9 = arith.constant 0 : i32
    %11 = arith.cmpi ne, %10, %c0_i32_9 : i32
    scf.if %11 {
      %c0_10 = arith.constant 0 : index
      %c0_11 = arith.constant 0 : index
      %12 = vector.load %arg7[%c0_10, %c0_11] : memref<8x256xf32, #tpu.memory_space<vmem>>, vector<8x256xf32>
      %c0_12 = arith.constant 0 : index
      %c0_13 = arith.constant 0 : index
      %13 = vector.load %arg5[%c0_12, %c0_13] : memref<1x256xbf16, #tpu.memory_space<vmem>>, vector<1x256xbf16>
      %14 = arith.extf %13 : vector<1x256xbf16> to vector<1x256xf32>
      %15 = vector.broadcast %14 : vector<1x256xf32> to vector<8x256xf32>
      %16 = arith.addf %12, %15 : vector<8x256xf32>
      %c0_14 = arith.constant 0 : index
      %c0_15 = arith.constant 0 : index
      %17 = vector.load %arg6[%c0_14, %c0_15] : memref<8x256xf32, #tpu.memory_space<vmem>>, vector<8x256xf32>
      tpu.vector_store %arg6[%c0_14, %c0_15], %16 {strides = array<i32>} : memref<8x256xf32, #tpu.memory_space<vmem>>, vector<8x256xf32>,
    } else {
    }
    return
  }
  func.func @transform_0(%arg0: i32, %arg1: i32, %arg2: i32) -> (i32, i32) {
    %c0_i32 = arith.constant 0 : i32
    return %arg0, %arg2 : i32, i32
  }
  func.func @transform_1(%arg0: i32, %arg1: i32, %arg2: i32) -> (i32, i32) {
    %c0_i32 = arith.constant 0 : i32
    return %arg2, %arg1 : i32, i32
  }
  func.func @transform_2(%arg0: i32, %arg1: i32, %arg2: i32) -> (i32, i32) {
    %c0_i32 = arith.constant 0 : i32
    %c0_i32_0 = arith.constant 0 : i32
    return %c0_i32, %arg1 : i32, i32
  }
  func.func @transform_3(%arg0: i32, %arg1: i32, %arg2: i32) -> (i32, i32) {
    %c0_i32 = arith.constant 0 : i32
    return %arg0, %arg1 : i32, i32
  }
}

</mosaic_0001>

<llo_original>
// kernel: prefill.17
$region0: #{prefill.17}
  #allocation0 [shape = 'u32[]', space=smem, size = 0x4, offset = 0x4, fixed_abs, tag = 'smem constant byte address 0x4 - core index']
  #allocation1 [shape = 'u32[144,128]{1,0:T(1,128)}', space=vmem, size = 0x12000, scoped, tag = 'internal scratch']
  #allocation2 [shape = 'f32[16,96]{1,0:T(8,128)}', space=vmem, size = 0x2000, scoped, tag = 'scratch operand']
  %s0 = inlined_call_operand.vmem [shape: bf16[16,32], index: 0, kind: input, shape index: {}]
  %s1 = inlined_call_operand.vmem [shape: bf16[32,96], index: 1, kind: input, shape index: {}]
  %s2 = inlined_call_operand.vmem [shape: bf16[1,96], index: 2, kind: input, shape index: {}]
  %s3 = inlined_call_operand.vmem [shape: bf16[16,96], index: 3, kind: output, shape index: {}]
  %s4 = sld [smem:[#allocation0]]
  $region30: #{prefill.17} parent=0
    _
  %s6 = ssub.s32 1, %s4
  %s7 = scalar_select 0, %s6, %s4
  // Predicated region
  $region2: #{prefill.17} parent=0 // pred_check
    _
  $region3: #{prefill.17} parent=0 // pred_check_branch
    %9 = sbr.rel (0) target = $region5
  $region4: #{prefill.17} parent=0 // pred_region
    _
  $region5: #{prefill.17} parent=0 // pred_fallthru
    _
  // Predicated region
  $region6: #{prefill.17} parent=0 // pred_check
    _
  $region7: #{prefill.17} parent=0 // pred_check_branch
    %11 = sbr.rel (0) target = $region9
  $region8: #{prefill.17} parent=0 // pred_region
    _
  $region9: #{prefill.17} parent=0 // pred_fallthru
    _
  // Predicated region
  $region10: #{prefill.17} parent=0 // pred_check
    _
  $region11: #{prefill.17} parent=0 // pred_check_branch
    %13 = sbr.rel (0) target = $region13
  $region12: #{prefill.17} parent=0 // pred_region
    _
  $region13: #{prefill.17} parent=0 // pred_fallthru
    _
  %p15 = scmp.eq.s32.totalorder 0, 0
  // Predicated region
  $region14: #{prefill.17} parent=0 // pred_check
    %p16 = pneg %p15
  $region15: #{prefill.17} parent=0 // pred_check_branch
    %18 = sbr.rel (%p16) target = $region17
  $region16: #{prefill.17} parent=0 // pred_region
    %vm19 = vcmask 785408
    %20 = vst.msk [vmem:[#allocation2] sm:$0xff] %vm19, 0.0
    %21 = vst.msk [vmem:[#allocation2 + $0x8] sm:$0xff] %vm19, 0.0
  $region17: #{prefill.17} parent=0 // pred_fallthru
    _
  %v22 = vld [vmem:[#allocation2] sm:$0xff]
  %v23 = vld [vmem:[#allocation2 + $0x8] sm:$0xff]
  %v24 = vld [vmem:[%s0] sm:$0xf]
  %v25 = vld [vmem:[%s0 + $0x4] sm:$0xf]
  %v26 = vld [vmem:[%s1] sm:$0xf]
  %v27 = vld [vmem:[%s1 + $0x4] sm:$0xf]
  %v28 = vld [vmem:[%s1 + $0x8] sm:$0xf]
  %v29 = vld [vmem:[%s1 + $0xc] sm:$0xf]
  %v32 = vunpack.c.l.b16 %v24
  %v33 = vunpack.c.l.b16 %v25
  %v34 = vpack.c.b16 %v33, %v32
  %v39 = vunpack.c.l.b16 %v26
  %v40 = vunpack.c.l.b16 %v27
  %v41 = vunpack.c.l.b16 %v28
  %v42 = vunpack.c.l.b16 %v29
  %v43 = vpack.c.b16 %v40, %v39
  %v44 = vpack.c.b16 %v42, %v41
  %vm47 = vcmask 261120
  %v49 = vsel %vm47, %v34, 0
  %51 = vmatprep.subr.bf16.mxu0 0
  %52 = vmatpush1.bf16.msra.mxu0 %v43
  %53 = vmatprep.subr.bf16.mxu0 0
  %54 = vmatpush1.bf16.msra.mxu0 %v44
  %55 = vmatprep.subr.bf16.mxu0 0
  %56 = vmatpush1.bf16.msra.mxu0 0
  %57 = vmatprep.subr.bf16.mxu0 0
  %58 = vmatpush1.bf16.msra.mxu0 0
  %59 = vmatprep.subr.bf16.mxu0 0
  %60 = vmatpush1.bf16.msra.mxu0 0
  %61 = vmatprep.subr.bf16.mxu0 0
  %62 = vmatpush1.bf16.msra.mxu0 0
  %63 = vmatprep.subr.bf16.mxu0 0
  %64 = vmatpush1.bf16.msra.mxu0 0
  %65 = vmatprep.subr.bf16.mxu0 0
  %66 = vmatpush1.bf16.msra.mxu0 0
  %67 = vmatprep.subr.bf16.mxu0 0
  %68 = vmatpush1.bf16.msra.mxu0 0
  %69 = vmatprep.subr.bf16.mxu0 0
  %70 = vmatpush1.bf16.msra.mxu0 0
  %71 = vmatprep.subr.bf16.mxu0 0
  %72 = vmatpush1.bf16.msra.mxu0 0
  %73 = vmatprep.subr.bf16.mxu0 0
  %74 = vmatpush1.bf16.msra.mxu0 0
  %75 = vmatprep.subr.bf16.mxu0 0
  %76 = vmatpush1.bf16.msra.mxu0 0
  %77 = vmatprep.subr.bf16.mxu0 0
  %78 = vmatpush1.bf16.msra.mxu0 0
  %79 = vmatprep.subr.bf16.mxu0 0
  %80 = vmatpush1.bf16.msra.mxu0 0
  %81 = vmatprep.subr.bf16.mxu0 0
  %82 = vmatpush1.bf16.msra.mxu0 0
  %83 = vmatprep.mubr.bf16.mxu0 0
  %84 = vmatmul.mubr.bf16.gmra.mrb[0].mxu0 %v49
  %v85 = vpop.f32.mrb[0].mxu0
  %v86 = vadd.f32 0.0, %v85
  %v87 = vpop.f32.mrb[0].mxu0
  %v88 = vpop.f32.mrb[0].mxu0
  %v89 = vadd.f32 0.0, %v88
  %v90 = vpop.f32.mrb[0].mxu0
  %91 = vdwg.mxu0
  %v92 = vadd.f32 %v22, %v86
  %v93 = vadd.f32 %v23, %v89
  %vm94 = vcmask 785408
  %95 = vst.msk [vmem:[#allocation2] sm:$0xff] %vm94, %v92
  %96 = vst.msk [vmem:[#allocation2 + $0x8] sm:$0xff] %vm94, %v93
  // Predicated region
  $region18: #{prefill.17} parent=0 // pred_check
    %p97 = pneg %p15
  $region19: #{prefill.17} parent=0 // pred_check_branch
    %99 = sbr.rel (%p97) target = $region21
  $region20: #{prefill.17} parent=0 // pred_region
    %v100 = vld [vmem:[#allocation2] sm:$0xff]
    %v101 = vld [vmem:[#allocation2 + $0x8] sm:$0xff]
    %v102 = vld [vmem:[%s2] sm:$0x1]
    %v103 = vunpack.c.l.bf16 %v102
    %v104 = vlaneseq
    %v105 = vshrl.u32 %v104, 7
    %v106 = vsub.s32 0, %v105
    %v107 = vrot.slane %v103, %v106
    %v108 = vadd.f32 %v100, %v107
    %v109 = vadd.f32 %v101, %v107
    %v110 = vpack.c.bf16 %v109, %v108
    %v112 = vunpack.c.l.b16 %v110
    %v113 = vunpack.c.h.b16 %v110
    %v114 = vpack.c.b16 %v112, %v112
    %v115 = vpack.c.b16 %v113, %v113
    %vm118 = vcmask 781312
    %119 = vst.msk [vmem:[%s3] sm:$0xf] %vm118, %v114
    %120 = vst.msk [vmem:[%s3 + $0x4] sm:$0xf] %vm118, %v115
  $region21: #{prefill.17} parent=0 // pred_fallthru
    _
  // Predicated region
  $region22: #{prefill.17} parent=0 // pred_check
    _
  $region23: #{prefill.17} parent=0 // pred_check_branch
    %122 = sbr.rel (0) target = $region25
  $region24: #{prefill.17} parent=0 // pred_region
    _
  $region25: #{prefill.17} parent=0 // pred_fallthru
    _
  // Predicated region
  $region26: #{prefill.17} parent=0 // pred_check
    _
  $region27: #{prefill.17} parent=0 // pred_check_branch
    %124 = sbr.rel (0) target = $region29
  $region28: #{prefill.17} parent=0 // pred_region
    _
  $region29: #{prefill.17} parent=0 // pred_fallthru
    _

// kernel: prefill.16
$region0: #{prefill.16}
  #allocation0 [shape = 'u32[]', space=smem, size = 0x4, offset = 0x4, fixed_abs, tag = 'smem constant byte address 0x4 - core index']
  #allocation1 [shape = 'u32[144,128]{1,0:T(1,128)}', space=vmem, size = 0x12000, scoped, tag = 'internal scratch']
  %s0 = inlined_call_operand.vmem [shape: bf16[16,32], index: 0, kind: input, shape index: {}]
  %s1 = inlined_call_operand.vmem [shape: f32[1,32], index: 1, kind: input, shape index: {}]
  %s2 = inlined_call_operand.vmem [shape: f32[1,32], index: 2, kind: input, shape index: {}]
  %s3 = inlined_call_operand.vmem [shape: bf16[16,32], index: 3, kind: output, shape index: {}]
  %s4 = sld [smem:[#allocation0]]
  $region22: #{prefill.16} parent=0
    _
  %s6 = ssub.s32 1, %s4
  %s7 = scalar_select 0, %s6, %s4
  // Predicated region
  $region2: #{prefill.16} parent=0 // pred_check
    _
  $region3: #{prefill.16} parent=0 // pred_check_branch
    %9 = sbr.rel (0) target = $region5
  $region4: #{prefill.16} parent=0 // pred_region
    _
  $region5: #{prefill.16} parent=0 // pred_fallthru
    _
  // Predicated region
  $region6: #{prefill.16} parent=0 // pred_check
    _
  $region7: #{prefill.16} parent=0 // pred_check_branch
    %11 = sbr.rel (0) target = $region9
  $region8: #{prefill.16} parent=0 // pred_region
    _
  $region9: #{prefill.16} parent=0 // pred_fallthru
    _
  // Predicated region
  $region10: #{prefill.16} parent=0 // pred_check
    _
  $region11: #{prefill.16} parent=0 // pred_check_branch
    %13 = sbr.rel (0) target = $region13
  $region12: #{prefill.16} parent=0 // pred_region
    _
  $region13: #{prefill.16} parent=0 // pred_fallthru
    _
  %v14 = vld [vmem:[%s0] sm:$0xf]
  %v15 = vld [vmem:[%s0 + $0x4] sm:$0xf]
  %v16 = vunpack.c.l.bf16 %v14
  %v17 = vunpack.c.l.bf16 %v15
  %vm18 = vcmask 261120
  %v19 = vsel %vm18, %v16, 0.0
  %20 = vadd.xlane.f32.xlu0 %v19
  %v21 = vpop.xlane.xlu0 %20
  %v22 = vsel %vm18, %v17, 0.0
  %23 = vadd.xlane.f32.xlu0 %v22
  %v24 = vpop.xlane.xlu0 %23
  %v25 = vrcp.pop 32.0
  %v26 = vmul.f32 %v21, %v25
  %v27 = vmul.f32 %v24, %v25
  %v28 = vsub.f32 %v16, %v26
  %v29 = vsub.f32 %v17, %v27
  %v30 = vmul.f32 %v28, %v28
  %v31 = vmul.f32 %v29, %v29
  %v32 = vsel %vm18, %v30, 0.0
  %33 = vadd.xlane.f32.xlu0 %v32
  %v34 = vpop.xlane.xlu0 %33
  %v35 = vsel %vm18, %v31, 0.0
  %36 = vadd.xlane.f32.xlu0 %v35
  %v37 = vpop.xlane.xlu0 %36
  %v38 = vmul.f32 %v34, %v25
  %v39 = vmul.f32 %v37, %v25
  %v40 = vadd.f32 %v38, 1e-05
  %v41 = vadd.f32 %v39, 1e-05
  %v42 = vrsqrt.pop %v40
  %v43 = vrsqrt.pop %v41
  %v44 = vmul.f32 %v28, %v42
  %v45 = vmul.f32 %v29, %v43
  %v46 = vld [vmem:[%s1] sm:$0x1]
  %v48 = vlaneseq
  %v49 = vshrl.u32 %v48, 7
  %v50 = vsub.s32 0, %v49
  %v51 = vrot.slane %v46, %v50
  %v53 = vmul.f32 %v44, %v51
  %v54 = vmul.f32 %v45, %v51
  %v55 = vld [vmem:[%s2] sm:$0x1]
  %v57 = vlaneseq
  %v58 = vshrl.u32 %v57, 7
  %v59 = vsub.s32 0, %v58
  %v60 = vrot.slane %v55, %v59
  %v62 = vadd.f32 %v53, %v60
  %v63 = vadd.f32 %v54, %v60
  %v64 = vpack.c.bf16 %v63, %v62
  %v66 = vunpack.c.l.b16 %v64
  %v67 = vunpack.c.h.b16 %v64
  %v68 = vpack.c.b16 %v66, %v66
  %v69 = vpack.c.b16 %v67, %v67
  %vm72 = vcmask 257024
  %73 = vst.msk [vmem:[%s3] sm:$0xf] %vm72, %v68
  %74 = vst.msk [vmem:[%s3 + $0x4] sm:$0xf] %vm72, %v69
  // Predicated region
  $region14: #{prefill.16} parent=0 // pred_check
    _
  $region15: #{prefill.16} parent=0 // pred_check_branch
    %76 = sbr.rel (0) target = $region17
  $region16: #{prefill.16} parent=0 // pred_region
    _
  $region17: #{prefill.16} parent=0 // pred_fallthru
    _
  // Predicated region
  $region18: #{prefill.16} parent=0 // pred_check
    _
  $region19: #{prefill.16} parent=0 // pred_check_branch
    %78 = sbr.rel (0) target = $region21
  $region20: #{prefill.16} parent=0 // pred_region
    _
  $region21: #{prefill.16} parent=0 // pred_fallthru
    _

// kernel: prefill.19
$region0: #{prefill.19}
  #allocation0 [shape = 'u32[]', space=smem, size = 0x4, offset = 0x4, fixed_abs, tag = 'smem constant byte address 0x4 - core index']
  #allocation1 [shape = 'u32[144,128]{1,0:T(1,128)}', space=vmem, size = 0x12000, scoped, tag = 'internal scratch']
  #allocation2 [shape = 'f32[16,32]{1,0:T(8,128)}', space=vmem, size = 0x2000, scoped, tag = 'scratch operand']
  %s0 = inlined_call_operand.vmem [shape: bf16[16,32], index: 0, kind: input, shape index: {}]
  %s1 = inlined_call_operand.vmem [shape: bf16[32,32], index: 1, kind: input, shape index: {}]
  %s2 = inlined_call_operand.vmem [shape: bf16[1,32], index: 2, kind: input, shape index: {}]
  %s3 = inlined_call_operand.vmem [shape: bf16[16,32], index: 3, kind: input, shape index: {}]
  %s4 = inlined_call_operand.vmem [shape: bf16[16,32], index: 4, kind: output, shape index: {}]
  %s5 = sld [smem:[#allocation0]]
  $region34: #{prefill.19} parent=0
    _
  %s7 = ssub.s32 1, %s5
  %s8 = scalar_select 0, %s7, %s5
  // Predicated region
  $region2: #{prefill.19} parent=0 // pred_check
    _
  $region3: #{prefill.19} parent=0 // pred_check_branch
    %10 = sbr.rel (0) target = $region5
  $region4: #{prefill.19} parent=0 // pred_region
    _
  $region5: #{prefill.19} parent=0 // pred_fallthru
    _
  // Predicated region
  $region6: #{prefill.19} parent=0 // pred_check
    _
  $region7: #{prefill.19} parent=0 // pred_check_branch
    %12 = sbr.rel (0) target = $region9
  $region8: #{prefill.19} parent=0 // pred_region
    _
  $region9: #{prefill.19} parent=0 // pred_fallthru
    _
  // Predicated region
  $region10: #{prefill.19} parent=0 // pred_check
    _
  $region11: #{prefill.19} parent=0 // pred_check_branch
    %14 = sbr.rel (0) target = $region13
  $region12: #{prefill.19} parent=0 // pred_region
    _
  $region13: #{prefill.19} parent=0 // pred_fallthru
    _
  // Predicated region
  $region14: #{prefill.19} parent=0 // pred_check
    _
  $region15: #{prefill.19} parent=0 // pred_check_branch
    %16 = sbr.rel (0) target = $region17
  $region16: #{prefill.19} parent=0 // pred_region
    _
  $region17: #{prefill.19} parent=0 // pred_fallthru
    _
  %p18 = scmp.eq.s32.totalorder 0, 0
  // Predicated region
  $region18: #{prefill.19} parent=0 // pred_check
    %p19 = pneg %p18
  $region19: #{prefill.19} parent=0 // pred_check_branch
    %21 = sbr.rel (%p19) target = $region21
  $region20: #{prefill.19} parent=0 // pred_region
    %vm22 = vcmask 261120
    %23 = vst.msk [vmem:[#allocation2] sm:$0xff] %vm22, 0.0
    %24 = vst.msk [vmem:[#allocation2 + $0x8] sm:$0xff] %vm22, 0.0
  $region21: #{prefill.19} parent=0 // pred_fallthru
    _
  %v25 = vld [vmem:[#allocation2] sm:$0xff]
  %v26 = vld [vmem:[#allocation2 + $0x8] sm:$0xff]
  %v27 = vld [vmem:[%s0] sm:$0xf]
  %v28 = vld [vmem:[%s0 + $0x4] sm:$0xf]
  %v29 = vld [vmem:[%s1] sm:$0xf]
  %v30 = vld [vmem:[%s1 + $0x4] sm:$0xf]
  %v31 = vld [vmem:[%s1 + $0x8] sm:$0xf]
  %v32 = vld [vmem:[%s1 + $0xc] sm:$0xf]
  %v35 = vunpack.c.l.b16 %v27
  %v36 = vunpack.c.l.b16 %v28
  %v37 = vpack.c.b16 %v36, %v35
  %v42 = vunpack.c.l.b16 %v29
  %v43 = vunpack.c.l.b16 %v30
  %v44 = vunpack.c.l.b16 %v31
  %v45 = vunpack.c.l.b16 %v32
  %v46 = vpack.c.b16 %v43, %v42
  %v47 = vpack.c.b16 %v45, %v44
  %vm50 = vcmask 261120
  %v52 = vsel %vm50, %v37, 0
  %54 = vmatprep.subr.bf16.mxu0 0
  %55 = vmatpush1.bf16.msra.mxu0 %v46
  %56 = vmatprep.subr.bf16.mxu0 0
  %57 = vmatpush1.bf16.msra.mxu0 %v47
  %58 = vmatprep.subr.bf16.mxu0 0
  %59 = vmatpush1.bf16.msra.mxu0 0
  %60 = vmatprep.subr.bf16.mxu0 0
  %61 = vmatpush1.bf16.msra.mxu0 0
  %62 = vmatprep.subr.bf16.mxu0 0
  %63 = vmatpush1.bf16.msra.mxu0 0
  %64 = vmatprep.subr.bf16.mxu0 0
  %65 = vmatpush1.bf16.msra.mxu0 0
  %66 = vmatprep.subr.bf16.mxu0 0
  %67 = vmatpush1.bf16.msra.mxu0 0
  %68 = vmatprep.subr.bf16.mxu0 0
  %69 = vmatpush1.bf16.msra.mxu0 0
  %70 = vmatprep.subr.bf16.mxu0 0
  %71 = vmatpush1.bf16.msra.mxu0 0
  %72 = vmatprep.subr.bf16.mxu0 0
  %73 = vmatpush1.bf16.msra.mxu0 0
  %74 = vmatprep.subr.bf16.mxu0 0
  %75 = vmatpush1.bf16.msra.mxu0 0
  %76 = vmatprep.subr.bf16.mxu0 0
  %77 = vmatpush1.bf16.msra.mxu0 0
  %78 = vmatprep.subr.bf16.mxu0 0
  %79 = vmatpush1.bf16.msra.mxu0 0
  %80 = vmatprep.subr.bf16.mxu0 0
  %81 = vmatpush1.bf16.msra.mxu0 0
  %82 = vmatprep.subr.bf16.mxu0 0
  %83 = vmatpush1.bf16.msra.mxu0 0
  %84 = vmatprep.subr.bf16.mxu0 0
  %85 = vmatpush1.bf16.msra.mxu0 0
  %86 = vmatprep.mubr.bf16.mxu0 0
  %87 = vmatmul.mubr.bf16.gmra.mrb[0].mxu0 %v52
  %v88 = vpop.f32.mrb[0].mxu0
  %v89 = vadd.f32 0.0, %v88
  %v90 = vpop.f32.mrb[0].mxu0
  %v91 = vpop.f32.mrb[0].mxu0
  %v92 = vadd.f32 0.0, %v91
  %v93 = vpop.f32.mrb[0].mxu0
  %94 = vdwg.mxu0
  %v95 = vadd.f32 %v25, %v89
  %v96 = vadd.f32 %v26, %v92
  %97 = vst.msk [vmem:[#allocation2] sm:$0xff] %vm50, %v95
  %98 = vst.msk [vmem:[#allocation2 + $0x8] sm:$0xff] %vm50, %v96
  // Predicated region
  $region22: #{prefill.19} parent=0 // pred_check
    %p99 = pneg %p18
  $region23: #{prefill.19} parent=0 // pred_check_branch
    %101 = sbr.rel (%p99) target = $region25
  $region24: #{prefill.19} parent=0 // pred_region
    %v102 = vld [vmem:[#allocation2] sm:$0xff]
    %v103 = vld [vmem:[#allocation2 + $0x8] sm:$0xff]
    %v104 = vld [vmem:[%s2] sm:$0x1]
    %v105 = vunpack.c.l.bf16 %v104
    %v106 = vlaneseq
    %v107 = vshrl.u32 %v106, 7
    %v108 = vsub.s32 0, %v107
    %v109 = vrot.slane %v105, %v108
    %v110 = vadd.f32 %v102, %v109
    %v111 = vadd.f32 %v103, %v109
    %v112 = vld [vmem:[%s3] sm:$0xf]
    %v113 = vld [vmem:[%s3 + $0x4] sm:$0xf]
    %v114 = vunpack.c.l.bf16 %v112
    %v115 = vunpack.c.l.bf16 %v113
    %v116 = vadd.f32 %v110, %v114
    %v117 = vadd.f32 %v111, %v115
    %v118 = vpack.c.bf16 %v117, %v116
    %v120 = vunpack.c.l.b16 %v118
    %v121 = vunpack.c.h.b16 %v118
    %v122 = vpack.c.b16 %v120, %v120
    %v123 = vpack.c.b16 %v121, %v121
    %vm126 = vcmask 257024
    %127 = vst.msk [vmem:[%s4] sm:$0xf] %vm126, %v122
    %128 = vst.msk [vmem:[%s4 + $0x4] sm:$0xf] %vm126, %v123
  $region25: #{prefill.19} parent=0 // pred_fallthru
    _
  // Predicated region
  $region26: #{prefill.19} parent=0 // pred_check
    _
  $region27: #{prefill.19} parent=0 // pred_check_branch
    %130 = sbr.rel (0) target = $region29
  $region28: #{prefill.19} parent=0 // pred_region
    _
  $region29: #{prefill.19} parent=0 // pred_fallthru
    _
  // Predicated region
  $region30: #{prefill.19} parent=0 // pred_check
    _
  $region31: #{prefill.19} parent=0 // pred_check_branch
    %132 = sbr.rel (0) target = $region33
  $region32: #{prefill.19} parent=0 // pred_region
    _
  $region33: #{prefill.19} parent=0 // pred_fallthru
    _

// kernel: prefill.21
$region0: #{prefill.21}
  #allocation0 [shape = 'u32[]', space=smem, size = 0x4, offset = 0x4, fixed_abs, tag = 'smem constant byte address 0x4 - core index']
  #allocation1 [shape = 'u32[144,128]{1,0:T(1,128)}', space=vmem, size = 0x12000, scoped, tag = 'internal scratch']
  #allocation2 [shape = 'f32[16,128]{1,0:T(8,128)}', space=vmem, size = 0x2000, scoped, tag = 'scratch operand']
  %s0 = inlined_call_operand.vmem [shape: bf16[16,32], index: 0, kind: input, shape index: {}]
  %s1 = inlined_call_operand.vmem [shape: bf16[32,128], index: 1, kind: input, shape index: {}]
  %s2 = inlined_call_operand.vmem [shape: bf16[1,128], index: 2, kind: input, shape index: {}]
  %s3 = inlined_call_operand.vmem [shape: bf16[16,128], index: 3, kind: output, shape index: {}]
  %s4 = sld [smem:[#allocation0]]
  $region30: #{prefill.21} parent=0
    _
  %s6 = ssub.s32 1, %s4
  %s7 = scalar_select 0, %s6, %s4
  // Predicated region
  $region2: #{prefill.21} parent=0 // pred_check
    _
  $region3: #{prefill.21} parent=0 // pred_check_branch
    %9 = sbr.rel (0) target = $region5
  $region4: #{prefill.21} parent=0 // pred_region
    _
  $region5: #{prefill.21} parent=0 // pred_fallthru
    _
  // Predicated region
  $region6: #{prefill.21} parent=0 // pred_check
    _
  $region7: #{prefill.21} parent=0 // pred_check_branch
    %11 = sbr.rel (0) target = $region9
  $region8: #{prefill.21} parent=0 // pred_region
    _
  $region9: #{prefill.21} parent=0 // pred_fallthru
    _
  // Predicated region
  $region10: #{prefill.21} parent=0 // pred_check
    _
  $region11: #{prefill.21} parent=0 // pred_check_branch
    %13 = sbr.rel (0) target = $region13
  $region12: #{prefill.21} parent=0 // pred_region
    _
  $region13: #{prefill.21} parent=0 // pred_fallthru
    _
  %p15 = scmp.eq.s32.totalorder 0, 0
  // Predicated region
  $region14: #{prefill.21} parent=0 // pred_check
    %p16 = pneg %p15
  $region15: #{prefill.21} parent=0 // pred_check_branch
    %18 = sbr.rel (%p16) target = $region17
  $region16: #{prefill.21} parent=0 // pred_region
    %19 = vst [vmem:[#allocation2] sm:$0xff] 0.0
    %20 = vst [vmem:[#allocation2 + $0x8] sm:$0xff] 0.0
  $region17: #{prefill.21} parent=0 // pred_fallthru
    _
  %v21 = vld [vmem:[#allocation2] sm:$0xff]
  %v22 = vld [vmem:[#allocation2 + $0x8] sm:$0xff]
  %v23 = vld [vmem:[%s0] sm:$0xf]
  %v24 = vld [vmem:[%s0 + $0x4] sm:$0xf]
  %v25 = vld [vmem:[%s1] sm:$0xf]
  %v26 = vld [vmem:[%s1 + $0x4] sm:$0xf]
  %v27 = vld [vmem:[%s1 + $0x8] sm:$0xf]
  %v28 = vld [vmem:[%s1 + $0xc] sm:$0xf]
  %v31 = vunpack.c.l.b16 %v23
  %v32 = vunpack.c.l.b16 %v24
  %v33 = vpack.c.b16 %v32, %v31
  %v38 = vunpack.c.l.b16 %v25
  %v39 = vunpack.c.l.b16 %v26
  %v40 = vunpack.c.l.b16 %v27
  %v41 = vunpack.c.l.b16 %v28
  %v42 = vpack.c.b16 %v39, %v38
  %v43 = vpack.c.b16 %v41, %v40
  %vm46 = vcmask 261120
  %v48 = vsel %vm46, %v33, 0
  %50 = vmatprep.subr.bf16.mxu0 0
  %51 = vmatpush1.bf16.msra.mxu0 %v42
  %52 = vmatprep.subr.bf16.mxu0 0
  %53 = vmatpush1.bf16.msra.mxu0 %v43
  %54 = vmatprep.subr.bf16.mxu0 0
  %55 = vmatpush1.bf16.msra.mxu0 0
  %56 = vmatprep.subr.bf16.mxu0 0
  %57 = vmatpush1.bf16.msra.mxu0 0
  %58 = vmatprep.subr.bf16.mxu0 0
  %59 = vmatpush1.bf16.msra.mxu0 0
  %60 = vmatprep.subr.bf16.mxu0 0
  %61 = vmatpush1.bf16.msra.mxu0 0
  %62 = vmatprep.subr.bf16.mxu0 0
  %63 = vmatpush1.bf16.msra.mxu0 0
  %64 = vmatprep.subr.bf16.mxu0 0
  %65 = vmatpush1.bf16.msra.mxu0 0
  %66 = vmatprep.subr.bf16.mxu0 0
  %67 = vmatpush1.bf16.msra.mxu0 0
  %68 = vmatprep.subr.bf16.mxu0 0
  %69 = vmatpush1.bf16.msra.mxu0 0
  %70 = vmatprep.subr.bf16.mxu0 0
  %71 = vmatpush1.bf16.msra.mxu0 0
  %72 = vmatprep.subr.bf16.mxu0 0
  %73 = vmatpush1.bf16.msra.mxu0 0
  %74 = vmatprep.subr.bf16.mxu0 0
  %75 = vmatpush1.bf16.msra.mxu0 0
  %76 = vmatprep.subr.bf16.mxu0 0
  %77 = vmatpush1.bf16.msra.mxu0 0
  %78 = vmatprep.subr.bf16.mxu0 0
  %79 = vmatpush1.bf16.msra.mxu0 0
  %80 = vmatprep.subr.bf16.mxu0 0
  %81 = vmatpush1.bf16.msra.mxu0 0
  %82 = vmatprep.mubr.bf16.mxu0 0
  %83 = vmatmul.mubr.bf16.gmra.mrb[0].mxu0 %v48
  %v84 = vpop.f32.mrb[0].mxu0
  %v85 = vadd.f32 0.0, %v84
  %v86 = vpop.f32.mrb[0].mxu0
  %v87 = vpop.f32.mrb[0].mxu0
  %v88 = vadd.f32 0.0, %v87
  %v89 = vpop.f32.mrb[0].mxu0
  %90 = vdwg.mxu0
  %v91 = vadd.f32 %v21, %v85
  %v92 = vadd.f32 %v22, %v88
  %93 = vst [vmem:[#allocation2] sm:$0xff] %v91
  %94 = vst [vmem:[#allocation2 + $0x8] sm:$0xff] %v92
  // Predicated region
  $region18: #{prefill.21} parent=0 // pred_check
    %p95 = pneg %p15
  $region19: #{prefill.21} parent=0 // pred_check_branch
    %97 = sbr.rel (%p95) target = $region21
  $region20: #{prefill.21} parent=0 // pred_region
    %v98 = vld [vmem:[#allocation2] sm:$0xff]
    %v99 = vld [vmem:[#allocation2 + $0x8] sm:$0xff]
    %v100 = vld [vmem:[%s2] sm:$0x1]
    %v101 = vunpack.c.l.bf16 %v100
    %v102 = vlaneseq
    %v103 = vshrl.u32 %v102, 7
    %v104 = vsub.s32 0, %v103
    %v105 = vrot.slane %v101, %v104
    %v106 = vadd.f32 %v98, %v105
    %v107 = vadd.f32 %v99, %v105
    %v108 = vmul.f32 %v106, %v106
    %v109 = vmul.f32 %v107, %v107
    %v110 = vmul.f32 %v106, %v108
    %v111 = vmul.f32 %v107, %v109
    %v112 = vmul.f32 %v110, 0.044715
    %v113 = vmul.f32 %v111, 0.044715
    %v114 = vadd.f32 %v106, %v112
    %v115 = vadd.f32 %v107, %v113
    %v116 = vmul.f32 %v114, 0.7978846
    %v117 = vmul.f32 %v115, 0.7978846
    %v118 = vtanh.pop %v116
    %v119 = vtanh.pop %v117
    %v120 = vadd.f32 %v118, 1.0
    %v121 = vadd.f32 %v119, 1.0
    %v122 = vmul.f32 %v120, 0.5
    %v123 = vmul.f32 %v121, 0.5
    %v124 = vmul.f32 %v106, %v122
    %v125 = vmul.f32 %v107, %v123
    %v126 = vpack.c.bf16 %v125, %v124
    %v128 = vunpack.c.l.b16 %v126
    %v129 = vunpack.c.h.b16 %v126
    %v130 = vpack.c.b16 %v128, %v128
    %v131 = vpack.c.b16 %v129, %v129
    %134 = vst [vmem:[%s3] sm:$0xf] %v130
    %135 = vst [vmem:[%s3 + $0x4] sm:$0xf] %v131
  $region21: #{prefill.21} parent=0 // pred_fallthru
    _
  // Predicated region
  $region22: #{prefill.21} parent=0 // pred_check
    _
  $region23: #{prefill.21} parent=0 // pred_check_branch
    %137 = sbr.rel (0) target = $region25
  $region24: #{prefill.21} parent=0 // pred_region
    _
  $region25: #{prefill.21} parent=0 // pred_fallthru
    _
  // Predicated region
  $region26: #{prefill.21} parent=0 // pred_check
    _
  $region27: #{prefill.21} parent=0 // pred_check_branch
    %139 = sbr.rel (0) target = $region29
  $region28: #{prefill.21} parent=0 // pred_region
    _
  $region29: #{prefill.21} parent=0 // pred_fallthru
    _

// kernel: prefill.22
$region0: #{prefill.22}
  #allocation0 [shape = 'u32[]', space=smem, size = 0x4, offset = 0x4, fixed_abs, tag = 'smem constant byte address 0x4 - core index']
  #allocation1 [shape = 'u32[144,128]{1,0:T(1,128)}', space=vmem, size = 0x12000, scoped, tag = 'internal scratch']
  #allocation2 [shape = 'f32[16,32]{1,0:T(8,128)}', space=vmem, size = 0x2000, scoped, tag = 'scratch operand']
  %s0 = inlined_call_operand.vmem [shape: bf16[16,128], index: 0, kind: input, shape index: {}]
  %s1 = inlined_call_operand.vmem [shape: bf16[128,32], index: 1, kind: input, shape index: {}]
  %s2 = inlined_call_operand.vmem [shape: bf16[1,32], index: 2, kind: input, shape index: {}]
  %s3 = inlined_call_operand.vmem [shape: bf16[16,32], index: 3, kind: input, shape index: {}]
  %s4 = inlined_call_operand.vmem [shape: bf16[16,32], index: 4, kind: output, shape index: {}]
  %s5 = sld [smem:[#allocation0]]
  $region34: #{prefill.22} parent=0
    _
  %s7 = ssub.s32 1, %s5
  %s8 = scalar_select 0, %s7, %s5
  // Predicated region
  $region2: #{prefill.22} parent=0 // pred_check
    _
  $region3: #{prefill.22} parent=0 // pred_check_branch
    %10 = sbr.rel (0) target = $region5
  $region4: #{prefill.22} parent=0 // pred_region
    _
  $region5: #{prefill.22} parent=0 // pred_fallthru
    _
  // Predicated region
  $region6: #{prefill.22} parent=0 // pred_check
    _
  $region7: #{prefill.22} parent=0 // pred_check_branch
    %12 = sbr.rel (0) target = $region9
  $region8: #{prefill.22} parent=0 // pred_region
    _
  $region9: #{prefill.22} parent=0 // pred_fallthru
    _
  // Predicated region
  $region10: #{prefill.22} parent=0 // pred_check
    _
  $region11: #{prefill.22} parent=0 // pred_check_branch
    %14 = sbr.rel (0) target = $region13
  $region12: #{prefill.22} parent=0 // pred_region
    _
  $region13: #{prefill.22} parent=0 // pred_fallthru
    _
  // Predicated region
  $region14: #{prefill.22} parent=0 // pred_check
    _
  $region15: #{prefill.22} parent=0 // pred_check_branch
    %16 = sbr.rel (0) target = $region17
  $region16: #{prefill.22} parent=0 // pred_region
    _
  $region17: #{prefill.22} parent=0 // pred_fallthru
    _
  %p18 = scmp.eq.s32.totalorder 0, 0
  // Predicated region
  $region18: #{prefill.22} parent=0 // pred_check
    %p19 = pneg %p18
  $region19: #{prefill.22} parent=0 // pred_check_branch
    %21 = sbr.rel (%p19) target = $region21
  $region20: #{prefill.22} parent=0 // pred_region
    %vm22 = vcmask 261120
    %23 = vst.msk [vmem:[#allocation2] sm:$0xff] %vm22, 0.0
    %24 = vst.msk [vmem:[#allocation2 + $0x8] sm:$0xff] %vm22, 0.0
  $region21: #{prefill.22} parent=0 // pred_fallthru
    _
  %v25 = vld [vmem:[#allocation2] sm:$0xff]
  %v26 = vld [vmem:[#allocation2 + $0x8] sm:$0xff]
  %v27 = vld [vmem:[%s0] sm:$0xf]
  %v28 = vld [vmem:[%s0 + $0x4] sm:$0xf]
  %v29 = vld [vmem:[%s1] sm:$0xf]
  %v30 = vld [vmem:[%s1 + $0x4] sm:$0xf]
  %v31 = vld [vmem:[%s1 + $0x8] sm:$0xf]
  %v32 = vld [vmem:[%s1 + $0xc] sm:$0xf]
  %v33 = vld [vmem:[%s1 + $0x10] sm:$0xf]
  %v34 = vld [vmem:[%s1 + $0x14] sm:$0xf]
  %v35 = vld [vmem:[%s1 + $0x18] sm:$0xf]
  %v36 = vld [vmem:[%s1 + $0x1c] sm:$0xf]
  %v37 = vld [vmem:[%s1 + $0x20] sm:$0xf]
  %v38 = vld [vmem:[%s1 + $0x24] sm:$0xf]
  %v39 = vld [vmem:[%s1 + $0x28] sm:$0xf]
  %v40 = vld [vmem:[%s1 + $0x2c] sm:$0xf]
  %v41 = vld [vmem:[%s1 + $0x30] sm:$0xf]
  %v42 = vld [vmem:[%s1 + $0x34] sm:$0xf]
  %v43 = vld [vmem:[%s1 + $0x38] sm:$0xf]
  %v44 = vld [vmem:[%s1 + $0x3c] sm:$0xf]
  %v47 = vunpack.c.l.b16 %v27
  %v48 = vunpack.c.l.b16 %v28
  %v49 = vpack.c.b16 %v48, %v47
  %v67 = vunpack.c.l.b16 %v29
  %v68 = vunpack.c.l.b16 %v30
  %v69 = vunpack.c.l.b16 %v31
  %v70 = vunpack.c.l.b16 %v32
  %v71 = vunpack.c.l.b16 %v33
  %v72 = vunpack.c.l.b16 %v34
  %v73 = vunpack.c.l.b16 %v35
  %v74 = vunpack.c.l.b16 %v36
  %v75 = vunpack.c.l.b16 %v37
  %v76 = vunpack.c.l.b16 %v38
  %v77 = vunpack.c.l.b16 %v39
  %v78 = vunpack.c.l.b16 %v40
  %v79 = vunpack.c.l.b16 %v41
  %v80 = vunpack.c.l.b16 %v42
  %v81 = vunpack.c.l.b16 %v43
  %v82 = vunpack.c.l.b16 %v44
  %v83 = vpack.c.b16 %v68, %v67
  %v84 = vpack.c.b16 %v70, %v69
  %v85 = vpack.c.b16 %v72, %v71
  %v86 = vpack.c.b16 %v74, %v73
  %v87 = vpack.c.b16 %v76, %v75
  %v88 = vpack.c.b16 %v78, %v77
  %v89 = vpack.c.b16 %v80, %v79
  %v90 = vpack.c.b16 %v82, %v81
  %99 = vmatprep.subr.bf16.mxu0 0
  %100 = vmatpush1.bf16.msra.mxu0 %v83
  %101 = vmatprep.subr.bf16.mxu0 0
  %102 = vmatpush1.bf16.msra.mxu0 %v84
  %103 = vmatprep.subr.bf16.mxu0 0
  %104 = vmatpush1.bf16.msra.mxu0 %v85
  %105 = vmatprep.subr.bf16.mxu0 0
  %106 = vmatpush1.bf16.msra.mxu0 %v86
  %107 = vmatprep.subr.bf16.mxu0 0
  %108 = vmatpush1.bf16.msra.mxu0 %v87
  %109 = vmatprep.subr.bf16.mxu0 0
  %110 = vmatpush1.bf16.msra.mxu0 %v88
  %111 = vmatprep.subr.bf16.mxu0 0
  %112 = vmatpush1.bf16.msra.mxu0 %v89
  %113 = vmatprep.subr.bf16.mxu0 0
  %114 = vmatpush1.bf16.msra.mxu0 %v90
  %115 = vmatprep.subr.bf16.mxu0 0
  %116 = vmatpush1.bf16.msra.mxu0 0
  %117 = vmatprep.subr.bf16.mxu0 0
  %118 = vmatpush1.bf16.msra.mxu0 0
  %119 = vmatprep.subr.bf16.mxu0 0
  %120 = vmatpush1.bf16.msra.mxu0 0
  %121 = vmatprep.subr.bf16.mxu0 0
  %122 = vmatpush1.bf16.msra.mxu0 0
  %123 = vmatprep.subr.bf16.mxu0 0
  %124 = vmatpush1.bf16.msra.mxu0 0
  %125 = vmatprep.subr.bf16.mxu0 0
  %126 = vmatpush1.bf16.msra.mxu0 0
  %127 = vmatprep.subr.bf16.mxu0 0
  %128 = vmatpush1.bf16.msra.mxu0 0
  %129 = vmatprep.subr.bf16.mxu0 0
  %130 = vmatpush1.bf16.msra.mxu0 0
  %131 = vmatprep.mubr.bf16.mxu0 0
  %132 = vmatmul.mubr.bf16.gmra.mrb[0].mxu0 %v49
  %v133 = vpop.f32.mrb[0].mxu0
  %v134 = vadd.f32 0.0, %v133
  %v135 = vpop.f32.mrb[0].mxu0
  %v136 = vpop.f32.mrb[0].mxu0
  %v137 = vadd.f32 0.0, %v136
  %v138 = vpop.f32.mrb[0].mxu0
  %139 = vdwg.mxu0
  %v140 = vadd.f32 %v25, %v134
  %v141 = vadd.f32 %v26, %v137
  %vm142 = vcmask 261120
  %143 = vst.msk [vmem:[#allocation2] sm:$0xff] %vm142, %v140
  %144 = vst.msk [vmem:[#allocation2 + $0x8] sm:$0xff] %vm142, %v141
  // Predicated region
  $region22: #{prefill.22} parent=0 // pred_check
    %p145 = pneg %p18
  $region23: #{prefill.22} parent=0 // pred_check_branch
    %147 = sbr.rel (%p145) target = $region25
  $region24: #{prefill.22} parent=0 // pred_region
    %v148 = vld [vmem:[#allocation2] sm:$0xff]
    %v149 = vld [vmem:[#allocation2 + $0x8] sm:$0xff]
    %v150 = vld [vmem:[%s2] sm:$0x1]
    %v151 = vunpack.c.l.bf16 %v150
    %v152 = vlaneseq
    %v153 = vshrl.u32 %v152, 7
    %v154 = vsub.s32 0, %v153
    %v155 = vrot.slane %v151, %v154
    %v156 = vadd.f32 %v148, %v155
    %v157 = vadd.f32 %v149, %v155
    %v158 = vld [vmem:[%s3] sm:$0xf]
    %v159 = vld [vmem:[%s3 + $0x4] sm:$0xf]
    %v160 = vunpack.c.l.bf16 %v158
    %v161 = vunpack.c.l.bf16 %v159
    %v162 = vadd.f32 %v156, %v160
    %v163 = vadd.f32 %v157, %v161
    %v164 = vpack.c.bf16 %v163, %v162
    %v166 = vunpack.c.l.b16 %v164
    %v167 = vunpack.c.h.b16 %v164
    %v168 = vpack.c.b16 %v166, %v166
    %v169 = vpack.c.b16 %v167, %v167
    %vm172 = vcmask 257024
    %173 = vst.msk [vmem:[%s4] sm:$0xf] %vm172, %v168
    %174 = vst.msk [vmem:[%s4 + $0x4] sm:$0xf] %vm172, %v169
  $region25: #{prefill.22} parent=0 // pred_fallthru
    _
  // Predicated region
  $region26: #{prefill.22} parent=0 // pred_check
    _
  $region27: #{prefill.22} parent=0 // pred_check_branch
    %176 = sbr.rel (0) target = $region29
  $region28: #{prefill.22} parent=0 // pred_region
    _
  $region29: #{prefill.22} parent=0 // pred_fallthru
    _
  // Predicated region
  $region30: #{prefill.22} parent=0 // pred_check
    _
  $region31: #{prefill.22} parent=0 // pred_check_branch
    %178 = sbr.rel (0) target = $region33
  $region32: #{prefill.22} parent=0 // pred_region
    _
  $region33: #{prefill.22} parent=0 // pred_fallthru
    _

// kernel: prefill.18
$region0: #{prefill.18}
  #allocation0 [shape = 'u32[]', space=smem, size = 0x4, offset = 0x4, fixed_abs, tag = 'smem constant byte address 0x4 - core index']
  #allocation1 [shape = 'u32[144,128]{1,0:T(1,128)}', space=vmem, size = 0x12000, scoped, tag = 'internal scratch']
  #allocation2 [shape = 's32[1]{0}', space=sflag, size = 0x4, scoped, tag = 'scoped memory for prefill.18']
  #allocation3 [shape = 'u8[512]{0}', space=smem, size = 0x200, scoped, tag = 'prefetched SMEM operand 0']
  %s0 = inlined_call_operand.vmem [shape: s32[2], index: 0, kind: input, shape index: {}]
  %s1 = inlined_call_operand.vmem [shape: bf16[2,8,32], index: 1, kind: input, shape index: {}]
  %s2 = inlined_call_operand.vmem [shape: bf16[2,8,32], index: 2, kind: input, shape index: {}]
  %s3 = inlined_call_operand.vmem [shape: bf16[2,8,32], index: 3, kind: input, shape index: {}]
  %s4 = inlined_call_operand.vmem [shape: bf16[2,8,32], index: 4, kind: output, shape index: {}]
  %s5 = sld [smem:[#allocation0]]
  $region45: #{prefill.18} parent=0
    _
  %s7 = ssub.s32 1, %s5
  %s8 = scalar_select 0, %s7, %s5
  %s9 = sshll.u32 %s0, 4
  %s10 = int_to_ptr.vmem [resolvable:$true] %s9
  %12 = dma.vmem_to_smem %s10, 16, [#allocation3], [#allocation2]
  %13 = dma.done [#allocation2], 16
  %14 = sfence
  loop: start=0, step=1, limit=4
  $region2: #{prefill.18} parent=0 // loop_pre_header
    _
  $region3: #{prefill.18} parent=0 // loop_header
    %s16 = sphi 0, %s20
    %p17 = scmp.ge.s32.totalorder %s16, 4
    %s26 = sphi 0, %s28
    %s29 = sphi 0, %s26
    %s30 = sphi 0, %s29
    %s46 = sphi 0, %s30
    %s52 = sphi 0, %s54
    %s55 = sphi 0, %s52
    %s56 = sphi 0, %s55
    %s72 = sphi 0, %s56
    %s78 = sphi 0, %s80
    %s81 = sphi 0, %s78
    %s82 = sphi 0, %s81
    %s98 = sphi 0, %s82
    %s104 = sphi 0, %s106
    %s107 = sphi 0, %s104
    %s108 = sphi 0, %s107
    %s124 = sphi 0, %s108
  $region4: #{prefill.18} parent=0 // loop_header_branch
    %19 = sbr.rel (%p17) target = $region8
  $region5: #{prefill.18} parent=0 // loop_body
    %s21 = ssub.s32 %s16, 1
    %s22 = ssub.s32 %s16, 2
    %s23 = sadd.s32 %s16, 1
    %s24 = ssub.s32 %s16, %s23
    %p25 = scmp.eq.s32.totalorder %s24, 0
    %s27 = sadd.s32 %s26, 1
    %s28 = scalar_select %p25, %s26, %s27
    %p31 = pneg %p25
    %p32 = scmp.eq.s32.totalorder %s16, 1
    %p33 = por %p31, %p32
    %p34 = scmp.ne.s32.totalorder %s26, %s29
    %p35 = scmp.eq.s32.totalorder %s16, 0
    %p36 = por %p34, %p35
    %p37 = scmp.ne.s32.totalorder %s26, %s29
    %p38 = scmp.eq.s32.totalorder %s21, 1
    %p39 = por %p37, %p38
    %p40 = scmp.ne.s32.totalorder %s29, %s30
    %p41 = scmp.eq.s32.totalorder %s21, 0
    %p42 = por %p40, %p41
    %p43 = scmp.ne.s32.totalorder %s29, %s30
    %p44 = scmp.eq.s32.totalorder %s22, 1
    %p45 = por %p43, %p44
    %p47 = scmp.ne.s32.totalorder %s30, %s46
    %p48 = scmp.eq.s32.totalorder %s22, 0
    %p49 = por %p47, %p48
    %s50 = ssub.s32 %s16, %s23
    %p51 = scmp.eq.s32.totalorder %s50, 0
    %s53 = sadd.s32 %s52, 1
    %s54 = scalar_select %p51, %s52, %s53
    %p57 = pneg %p51
    %p58 = scmp.eq.s32.totalorder %s16, 1
    %p59 = por %p57, %p58
    %p60 = scmp.ne.s32.totalorder %s52, %s55
    %p61 = scmp.eq.s32.totalorder %s16, 0
    %p62 = por %p60, %p61
    %p63 = scmp.ne.s32.totalorder %s52, %s55
    %p64 = scmp.eq.s32.totalorder %s21, 1
    %p65 = por %p63, %p64
    %p66 = scmp.ne.s32.totalorder %s55, %s56
    %p67 = scmp.eq.s32.totalorder %s21, 0
    %p68 = por %p66, %p67
    %p69 = scmp.ne.s32.totalorder %s55, %s56
    %p70 = scmp.eq.s32.totalorder %s22, 1
    %p71 = por %p69, %p70
    %p73 = scmp.ne.s32.totalorder %s56, %s72
    %p74 = scmp.eq.s32.totalorder %s22, 0
    %p75 = por %p73, %p74
    %s76 = ssub.s32 %s16, %s23
    %p77 = scmp.eq.s32.totalorder %s76, 0
    %s79 = sadd.s32 %s78, 1
    %s80 = scalar_select %p77, %s78, %s79
    %p83 = pneg %p77
    %p84 = scmp.eq.s32.totalorder %s16, 1
    %p85 = por %p83, %p84
    %p86 = scmp.ne.s32.totalorder %s78, %s81
    %p87 = scmp.eq.s32.totalorder %s16, 0
    %p88 = por %p86, %p87
    %p89 = scmp.ne.s32.totalorder %s78, %s81
    %p90 = scmp.eq.s32.totalorder %s21, 1
    %p91 = por %p89, %p90
    %p92 = scmp.ne.s32.totalorder %s81, %s82
    %p93 = scmp.eq.s32.totalorder %s21, 0
    %p94 = por %p92, %p93
    %p95 = scmp.ne.s32.totalorder %s81, %s82
    %p96 = scmp.eq.s32.totalorder %s22, 1
    %p97 = por %p95, %p96
    %p99 = scmp.ne.s32.totalorder %s82, %s98
    %p100 = scmp.eq.s32.totalorder %s22, 0
    %p101 = por %p99, %p100
    %s102 = ssub.s32 %s16, %s23
    %p103 = scmp.eq.s32.totalorder %s102, 0
    %s105 = sadd.s32 %s104, 1
    %s106 = scalar_select %p103, %s104, %s105
    %p109 = pneg %p103
    %p110 = scmp.eq.s32.totalorder %s16, 1
    %p111 = por %p109, %p110
    %p112 = scmp.ne.s32.totalorder %s104, %s107
    %p113 = scmp.eq.s32.totalorder %s16, 0
    %p114 = por %p112, %p113
    %p115 = scmp.ne.s32.totalorder %s104, %s107
    %p116 = scmp.eq.s32.totalorder %s21, 1
    %p117 = por %p115, %p116
    %p118 = scmp.ne.s32.totalorder %s107, %s108
    %p119 = scmp.eq.s32.totalorder %s21, 0
    %p120 = por %p118, %p119
    %p121 = scmp.ne.s32.totalorder %s107, %s108
    %p122 = scmp.eq.s32.totalorder %s22, 1
    %p123 = por %p121, %p122
    %p125 = scmp.ne.s32.totalorder %s108, %s124
    %p126 = scmp.eq.s32.totalorder %s22, 0
    %p127 = por %p125, %p126
    %p128 = scmp.le.s32.totalorder 1, %s16
    %p129 = scmp.lt.s32.totalorder %s16, 3
    %p130 = pnand %p128, %p129
    %p131 = pneg %p130
    // Predicated region
    $region9: #{prefill.18} parent=5 // pred_check
      _
    $region10: #{prefill.18} parent=5 // pred_check_branch
      %133 = sbr.rel (%p130) target = $region12
    $region11: #{prefill.18} parent=5 // pred_region
      %s134 = ssub.s32 %s16, 1
    $region12: #{prefill.18} parent=5 // pred_fallthru
      _
    %p135 = scmp.lt.s32.totalorder %s16, 2
    // Predicated region
    $region13: #{prefill.18} parent=5 // pred_check
      %p136 = pneg %p135
    $region14: #{prefill.18} parent=5 // pred_check_branch
      %138 = sbr.rel (%p136) target = $region16
    $region15: #{prefill.18} parent=5 // pred_region
      // Predicated region
      $region17: #{prefill.18} parent=15 // pred_check
        %p139 = pneg %p36
      $region18: #{prefill.18} parent=15 // pred_check_branch
        %141 = sbr.rel (%p139) target = $region20
      $region19: #{prefill.18} parent=15 // pred_region
        %p142 = scmp.lt.s32.totalorder %s16, 1
        %s143 = scalar_select %p142, %s16, 1
        %s144 = smul.addr %s143, 4
        %s145 = scalar_lea.vmem %s1, %s144
      $region20: #{prefill.18} parent=15 // pred_fallthru
        _
      // Predicated region
      $region21: #{prefill.18} parent=15 // pred_check
        %p146 = pneg %p62
      $region22: #{prefill.18} parent=15 // pred_check_branch
        %148 = sbr.rel (%p146) target = $region24
      $region23: #{prefill.18} parent=15 // pred_region
        %p149 = scmp.lt.s32.totalorder %s16, 1
        %s150 = scalar_select %p149, %s16, 1
        %s151 = smul.addr %s150, 4
        %s152 = scalar_lea.vmem %s2, %s151
      $region24: #{prefill.18} parent=15 // pred_fallthru
        _
      // Predicated region
      $region25: #{prefill.18} parent=15 // pred_check
        %p153 = pneg %p88
      $region26: #{prefill.18} parent=15 // pred_check_branch
        %155 = sbr.rel (%p153) target = $region28
      $region27: #{prefill.18} parent=15 // pred_region
        %p156 = scmp.lt.s32.totalorder %s16, 1
        %s157 = scalar_select %p156, %s16, 1
        %s158 = smul.addr %s157, 4
        %s159 = scalar_lea.vmem %s3, %s158
      $region28: #{prefill.18} parent=15 // pred_fallthru
        _
    $region16: #{prefill.18} parent=5 // pred_fallthru
      _
    %p160 = scmp.le.s32.totalorder 1, %s16
    %p161 = scmp.lt.s32.totalorder %s16, 3
    %p162 = pnand %p160, %p161
    %p163 = pneg %p162
    // Predicated region
    $region29: #{prefill.18} parent=5 // pred_check
      _
    $region30: #{prefill.18} parent=5 // pred_check_branch
      %165 = sbr.rel (%p162) target = $region32
    $region31: #{prefill.18} parent=5 // pred_region
      %s166 = ssub.s32 %s16, 1
      %p167 = scmp.lt.s32.totalorder %s21, 1
      %s168 = scalar_select %p167, %s21, 1
      %s169 = smul.addr %s168, 4
      %s170 = scalar_lea.vmem %s1, %s169
      %p171 = pneg %p42
      %p172 = pneg %p39
      %p173 = scmp.lt.s32.totalorder %s21, 1
      %s174 = scalar_select %p173, %s21, 1
      %s175 = smul.addr %s174, 4
      %s176 = scalar_lea.vmem %s2, %s175
      %p177 = pneg %p68
      %p178 = pneg %p65
      %p179 = scmp.lt.s32.totalorder %s21, 1
      %s180 = scalar_select %p179, %s21, 1
      %s181 = smul.addr %s180, 4
      %s182 = scalar_lea.vmem %s3, %s181
      %p183 = pneg %p94
      %p184 = pneg %p91
      %p185 = pneg %p120
      %p186 = pneg %p117
      %p187 = scmp.lt.s32.totalorder %s21, 1
      %s188 = scalar_select %p187, %s21, 1
      %s189 = smul.addr %s188, 4
      %s190 = scalar_lea.vmem %s4, %s189
      %p191 = scmp.lt.s32.totalorder %s21, 1
      %s192 = scalar_select %p191, %s21, 1
      %s193 = smul.addr %s192, 4
      %s194 = scalar_lea.vmem %s1, %s193
      %p195 = scmp.lt.s32.totalorder %s21, 1
      %s196 = scalar_select %p195, %s21, 1
      %s197 = smul.addr %s196, 4
      %s198 = scalar_lea.vmem %s2, %s197
      %p199 = scmp.lt.s32.totalorder %s21, 1
      %s200 = scalar_select %p199, %s21, 1
      %s201 = smul.addr %s200, 4
      %s202 = scalar_lea.vmem %s3, %s201
      %p203 = scmp.lt.s32.totalorder %s21, 1
      %s204 = scalar_select %p203, %s21, 1
      %s205 = smul.addr %s204, 4
      %s206 = scalar_lea.vmem %s4, %s205
      %s208 = sld [smem:[#allocation3 + %s21]]
      %v209 = vld [vmem:[%s194] sm:$0xf]
      %v210 = vunpack.c.l.bf16 %v209
      %v211 = vmul.f32 %v210, 0.35355338
      %v212 = vpack.c.bf16 %v211, %v211
      %v213 = vld [vmem:[%s198] sm:$0xf]
      %v214 = vld [vmem:[%s202] sm:$0xf]
      %v215 = vlaneseq
      %v216 = vshrl.u32 %v215, 7
      %v217 = vlaneseq
      %v218 = vand.u32 %v217, 127
      %v219 = vstv %s208
      %v220 = vadd.s32 %v216, %v219
      %vm221 = vcmp.le.s32.totalorder %v218, %v220
      %vm222 = vcmask 64512
      %v224 = vsel %vm222, %v212, 0
      %v227 = vsel %vm222, %v213, 0
      %229 = vmatprep.subr.bf16.mxu0 0
      %230 = vmatpush1.bf16.xpose.msra.mxu0 %v227
      %231 = vmatprep.subr.bf16.mxu0 0
      %232 = vmatpush1.bf16.xpose.msra.mxu0 0
      %233 = vmatprep.subr.bf16.mxu0 0
      %234 = vmatpush1.bf16.xpose.msra.mxu0 0
      %235 = vmatprep.subr.bf16.mxu0 0
      %236 = vmatpush1.bf16.xpose.msra.mxu0 0
      %237 = vmatprep.subr.bf16.mxu0 0
      %238 = vmatpush1.bf16.xpose.msra.mxu0 0
      %239 = vmatprep.subr.bf16.mxu0 0
      %240 = vmatpush1.bf16.xpose.msra.mxu0 0
      %241 = vmatprep.subr.bf16.mxu0 0
      %242 = vmatpush1.bf16.xpose.msra.mxu0 0
      %243 = vmatprep.subr.bf16.mxu0 0
      %244 = vmatpush1.bf16.xpose.msra.mxu0 0
      %245 = vmatprep.subr.bf16.mxu0 0
      %246 = vmatpush1.bf16.xpose.msra.mxu0 0
      %247 = vmatprep.subr.bf16.mxu0 0
      %248 = vmatpush1.bf16.xpose.msra.mxu0 0
      %249 = vmatprep.subr.bf16.mxu0 0
      %250 = vmatpush1.bf16.xpose.msra.mxu0 0
      %251 = vmatprep.subr.bf16.mxu0 0
      %252 = vmatpush1.bf16.xpose.msra.mxu0 0
      %253 = vmatprep.subr.bf16.mxu0 0
      %254 = vmatpush1.bf16.xpose.msra.mxu0 0
      %255 = vmatprep.subr.bf16.mxu0 0
      %256 = vmatpush1.bf16.xpose.msra.mxu0 0
      %257 = vmatprep.subr.bf16.mxu0 0
      %258 = vmatpush1.bf16.xpose.msra.mxu0 0
      %259 = vmatprep.subr.bf16.mxu0 0
      %260 = vmatpush1.bf16.xpose.msra.mxu0 0
      %261 = vmatprep.mubr.bf16.mxu0 0
      %262 = vmatmul.mubr.bf16.gmra.mrb[0].mxu0 %v224
      %v263 = vpop.f32.mrb[0].mxu0
      %v264 = vadd.f32 0.0, %v263
      %v265 = vpop.f32.mrb[0].mxu0
      %v266 = vpop.f32.mrb[0].mxu0
      %v267 = vpop.f32.mrb[0].mxu0
      %268 = vdwg.mxu0
      %v269 = vsel %vm221, %v264, -inf
      %v270 = vsel %vm222, %v269, -inf
      %271 = vmax.xlane.f32.xlu0 %v270
      %v272 = vpop.xlane.xlu0 %271
      %v273 = vsub.f32 %v269, %v272
      %v274 = vmul.f32 %v273, 1.442695
      %v275 = vpow.pop %v274
      %v276 = vsel %vm222, %v275, 0.0
      %277 = vadd.xlane.f32.xlu0 %v276
      %v278 = vpop.xlane.xlu0 %277
      %v279 = vrcp.pop %v278
      %v280 = vmul.f32 %v275, %v279
      %v281 = vpack.c.bf16 %v280, %v280
      %v283 = vsel %vm222, %v281, 0
      %vm285 = vcmask 1043456
      %v287 = vsel %vm285, %v214, 0
      %289 = vmatprep.subr.bf16.mxu0 0
      %290 = vmatpush1.bf16.msra.mxu0 %v287
      %291 = vmatprep.subr.bf16.mxu0 0
      %292 = vmatpush1.bf16.msra.mxu0 0
      %293 = vmatprep.subr.bf16.mxu0 0
      %294 = vmatpush1.bf16.msra.mxu0 0
      %295 = vmatprep.subr.bf16.mxu0 0
      %296 = vmatpush1.bf16.msra.mxu0 0
      %297 = vmatprep.subr.bf16.mxu0 0
      %298 = vmatpush1.bf16.msra.mxu0 0
      %299 = vmatprep.subr.bf16.mxu0 0
      %300 = vmatpush1.bf16.msra.mxu0 0
      %301 = vmatprep.subr.bf16.mxu0 0
      %302 = vmatpush1.bf16.msra.mxu0 0
      %303 = vmatprep.subr.bf16.mxu0 0
      %304 = vmatpush1.bf16.msra.mxu0 0
      %305 = vmatprep.subr.bf16.mxu0 0
      %306 = vmatpush1.bf16.msra.mxu0 0
      %307 = vmatprep.subr.bf16.mxu0 0
      %308 = vmatpush1.bf16.msra.mxu0 0
      %309 = vmatprep.subr.bf16.mxu0 0
      %310 = vmatpush1.bf16.msra.mxu0 0
      %311 = vmatprep.subr.bf16.mxu0 0
      %312 = vmatpush1.bf16.msra.mxu0 0
      %313 = vmatprep.subr.bf16.mxu0 0
      %314 = vmatpush1.bf16.msra.mxu0 0
      %315 = vmatprep.subr.bf16.mxu0 0
      %316 = vmatpush1.bf16.msra.mxu0 0
      %317 = vmatprep.subr.bf16.mxu0 0
      %318 = vmatpush1.bf16.msra.mxu0 0
      %319 = vmatprep.subr.bf16.mxu0 0
      %320 = vmatpush1.bf16.msra.mxu0 0
      %321 = vmatprep.mubr.bf16.mxu0 0
      %322 = vmatmul.mubr.bf16.gmra.mrb[0].mxu0 %v283
      %v323 = vpop.f32.mrb[0].mxu0
      %v324 = vadd.f32 0.0, %v323
      %v325 = vpop.f32.mrb[0].mxu0
      %v326 = vpop.f32.mrb[0].mxu0
      %v327 = vpop.f32.mrb[0].mxu0
      %328 = vdwg.mxu0
      %v329 = vpack.c.bf16 %v324, %v324
      %vm330 = vcmask 60416
      %331 = vst.msk [vmem:[%s206] sm:$0xf] %vm330, %v329
      %333 = vrot.lane.b32.xlu0 %v212, 120
      %v334 = vpop.permute.xlu0 %333
      %v336 = vunpack.c.l.b16 %v213
      %v337 = vpack.c.b16 %v336, %v336
      %338 = vrot.lane.b32.xlu0 %v337, 120
      %v339 = vpop.permute.xlu0 %338
      %v341 = vsel %vm222, %v334, 0
      %v344 = vsel %vm222, %v339, 0
      %346 = vmatprep.subr.bf16.mxu0 0
      %347 = vmatpush1.bf16.xpose.msra.mxu0 %v344
      %348 = vmatprep.subr.bf16.mxu0 0
      %349 = vmatpush1.bf16.xpose.msra.mxu0 0
      %350 = vmatprep.subr.bf16.mxu0 0
      %351 = vmatpush1.bf16.xpose.msra.mxu0 0
      %352 = vmatprep.subr.bf16.mxu0 0
      %353 = vmatpush1.bf16.xpose.msra.mxu0 0
      %354 = vmatprep.subr.bf16.mxu0 0
      %355 = vmatpush1.bf16.xpose.msra.mxu0 0
      %356 = vmatprep.subr.bf16.mxu0 0
      %357 = vmatpush1.bf16.xpose.msra.mxu0 0
      %358 = vmatprep.subr.bf16.mxu0 0
      %359 = vmatpush1.bf16.xpose.msra.mxu0 0
      %360 = vmatprep.subr.bf16.mxu0 0
      %361 = vmatpush1.bf16.xpose.msra.mxu0 0
      %362 = vmatprep.subr.bf16.mxu0 0
      %363 = vmatpush1.bf16.xpose.msra.mxu0 0
      %364 = vmatprep.subr.bf16.mxu0 0
      %365 = vmatpush1.bf16.xpose.msra.mxu0 0
      %366 = vmatprep.subr.bf16.mxu0 0
      %367 = vmatpush1.bf16.xpose.msra.mxu0 0
      %368 = vmatprep.subr.bf16.mxu0 0
      %369 = vmatpush1.bf16.xpose.msra.mxu0 0
      %370 = vmatprep.subr.bf16.mxu0 0
      %371 = vmatpush1.bf16.xpose.msra.mxu0 0
      %372 = vmatprep.subr.bf16.mxu0 0
      %373 = vmatpush1.bf16.xpose.msra.mxu0 0
      %374 = vmatprep.subr.bf16.mxu0 0
      %375 = vmatpush1.bf16.xpose.msra.mxu0 0
      %376 = vmatprep.subr.bf16.mxu0 0
      %377 = vmatpush1.bf16.xpose.msra.mxu0 0
      %378 = vmatprep.mubr.bf16.mxu0 0
      %379 = vmatmul.mubr.bf16.gmra.mrb[0].mxu0 %v341
      %v380 = vpop.f32.mrb[0].mxu0
      %v381 = vadd.f32 0.0, %v380
      %v382 = vpop.f32.mrb[0].mxu0
      %v383 = vpop.f32.mrb[0].mxu0
      %v384 = vpop.f32.mrb[0].mxu0
      %385 = vdwg.mxu0
      %v386 = vsel %vm221, %v381, -inf
      %v387 = vsel %vm222, %v386, -inf
      %388 = vmax.xlane.f32.xlu0 %v387
      %v389 = vpop.xlane.xlu0 %388
      %v390 = vsub.f32 %v386, %v389
      %v391 = vmul.f32 %v390, 1.442695
      %v392 = vpow.pop %v391
      %v393 = vsel %vm222, %v392, 0.0
      %394 = vadd.xlane.f32.xlu0 %v393
      %v395 = vpop.xlane.xlu0 %394
      %v396 = vrcp.pop %v395
      %v397 = vmul.f32 %v392, %v396
      %v398 = vpack.c.bf16 %v397, %v397
      %v400 = vunpack.c.l.b16 %v214
      %v401 = vpack.c.b16 %v400, %v400
      %402 = vrot.lane.b32.xlu0 %v401, 120
      %v403 = vpop.permute.xlu0 %402
      %v405 = vsel %vm222, %v398, 0
      %v408 = vsel %vm285, %v403, 0
      %410 = vmatprep.subr.bf16.mxu0 0
      %411 = vmatpush1.bf16.msra.mxu0 %v408
      %412 = vmatprep.subr.bf16.mxu0 0
      %413 = vmatpush1.bf16.msra.mxu0 0
      %414 = vmatprep.subr.bf16.mxu0 0
      %415 = vmatpush1.bf16.msra.mxu0 0
      %416 = vmatprep.subr.bf16.mxu0 0
      %417 = vmatpush1.bf16.msra.mxu0 0
      %418 = vmatprep.subr.bf16.mxu0 0
      %419 = vmatpush1.bf16.msra.mxu0 0
      %420 = vmatprep.subr.bf16.mxu0 0
      %421 = vmatpush1.bf16.msra.mxu0 0
      %422 = vmatprep.subr.bf16.mxu0 0
      %423 = vmatpush1.bf16.msra.mxu0 0
      %424 = vmatprep.subr.bf16.mxu0 0
      %425 = vmatpush1.bf16.msra.mxu0 0
      %426 = vmatprep.subr.bf16.mxu0 0
      %427 = vmatpush1.bf16.msra.mxu0 0
      %428 = vmatprep.subr.bf16.mxu0 0
      %429 = vmatpush1.bf16.msra.mxu0 0
      %430 = vmatprep.subr.bf16.mxu0 0
      %431 = vmatpush1.bf16.msra.mxu0 0
      %432 = vmatprep.subr.bf16.mxu0 0
      %433 = vmatpush1.bf16.msra.mxu0 0
      %434 = vmatprep.subr.bf16.mxu0 0
      %435 = vmatpush1.bf16.msra.mxu0 0
      %436 = vmatprep.subr.bf16.mxu0 0
      %437 = vmatpush1.bf16.msra.mxu0 0
      %438 = vmatprep.subr.bf16.mxu0 0
      %439 = vmatpush1.bf16.msra.mxu0 0
      %440 = vmatprep.subr.bf16.mxu0 0
      %441 = vmatpush1.bf16.msra.mxu0 0
      %442 = vmatprep.mubr.bf16.mxu0 0
      %443 = vmatmul.mubr.bf16.gmra.mrb[0].mxu0 %v405
      %v444 = vpop.f32.mrb[0].mxu0
      %v445 = vadd.f32 0.0, %v444
      %v446 = vpop.f32.mrb[0].mxu0
      %v447 = vpop.f32.mrb[0].mxu0
      %v448 = vpop.f32.mrb[0].mxu0
      %449 = vdwg.mxu0
      %v450 = vpack.c.bf16 %v445, %v445
      %v452 = vunpack.c.l.b16 %v450
      %v453 = vpack.c.b16 %v452, %v452
      %454 = vrot.lane.b32.xlu0 %v453, 8
      %v455 = vpop.permute.xlu0 %454
      %vm457 = vcmask 126016
      %458 = vst.msk [vmem:[%s206] sm:$0xf] %vm457, %v455
      %459 = vrot.lane.b32.xlu0 %v212, 112
      %v460 = vpop.permute.xlu0 %459
      %461 = vrot.lane.b32.xlu0 %v337, 112
      %v462 = vpop.permute.xlu0 %461
      %v464 = vsel %vm222, %v460, 0
      %v467 = vsel %vm222, %v462, 0
      %469 = vmatprep.subr.bf16.mxu0 0
      %470 = vmatpush1.bf16.xpose.msra.mxu0 %v467
      %471 = vmatprep.subr.bf16.mxu0 0
      %472 = vmatpush1.bf16.xpose.msra.mxu0 0
      %473 = vmatprep.subr.bf16.mxu0 0
      %474 = vmatpush1.bf16.xpose.msra.mxu0 0
      %475 = vmatprep.subr.bf16.mxu0 0
      %476 = vmatpush1.bf16.xpose.msra.mxu0 0
      %477 = vmatprep.subr.bf16.mxu0 0
      %478 = vmatpush1.bf16.xpose.msra.mxu0 0
      %479 = vmatprep.subr.bf16.mxu0 0
      %480 = vmatpush1.bf16.xpose.msra.mxu0 0
      %481 = vmatprep.subr.bf16.mxu0 0
      %482 = vmatpush1.bf16.xpose.msra.mxu0 0
      %483 = vmatprep.subr.bf16.mxu0 0
      %484 = vmatpush1.bf16.xpose.msra.mxu0 0
      %485 = vmatprep.subr.bf16.mxu0 0
      %486 = vmatpush1.bf16.xpose.msra.mxu0 0
      %487 = vmatprep.subr.bf16.mxu0 0
      %488 = vmatpush1.bf16.xpose.msra.mxu0 0
      %489 = vmatprep.subr.bf16.mxu0 0
      %490 = vmatpush1.bf16.xpose.msra.mxu0 0
      %491 = vmatprep.subr.bf16.mxu0 0
      %492 = vmatpush1.bf16.xpose.msra.mxu0 0
      %493 = vmatprep.subr.bf16.mxu0 0
      %494 = vmatpush1.bf16.xpose.msra.mxu0 0
      %495 = vmatprep.subr.bf16.mxu0 0
      %496 = vmatpush1.bf16.xpose.msra.mxu0 0
      %497 = vmatprep.subr.bf16.mxu0 0
      %498 = vmatpush1.bf16.xpose.msra.mxu0 0
      %499 = vmatprep.subr.bf16.mxu0 0
      %500 = vmatpush1.bf16.xpose.msra.mxu0 0
      %501 = vmatprep.mubr.bf16.mxu0 0
      %502 = vmatmul.mubr.bf16.gmra.mrb[0].mxu0 %v464
      %v503 = vpop.f32.mrb[0].mxu0
      %v504 = vadd.f32 0.0, %v503
      %v505 = vpop.f32.mrb[0].mxu0
      %v506 = vpop.f32.mrb[0].mxu0
      %v507 = vpop.f32.mrb[0].mxu0
      %508 = vdwg.mxu0
      %v509 = vsel %vm221, %v504, -inf
      %v510 = vsel %vm222, %v509, -inf
      %511 = vmax.xlane.f32.xlu0 %v510
      %v512 = vpop.xlane.xlu0 %511
      %v513 = vsub.f32 %v509, %v512
      %v514 = vmul.f32 %v513, 1.442695
      %v515 = vpow.pop %v514
      %v516 = vsel %vm222, %v515, 0.0
      %517 = vadd.xlane.f32.xlu0 %v516
      %v518 = vpop.xlane.xlu0 %517
      %v519 = vrcp.pop %v518
      %v520 = vmul.f32 %v515, %v519
      %v521 = vpack.c.bf16 %v520, %v520
      %522 = vrot.lane.b32.xlu0 %v401, 112
      %v523 = vpop.permute.xlu0 %522
      %v525 = vsel %vm222, %v521, 0
      %v528 = vsel %vm285, %v523, 0
      %530 = vmatprep.subr.bf16.mxu0 0
      %531 = vmatpush1.bf16.msra.mxu0 %v528
      %532 = vmatprep.subr.bf16.mxu0 0
      %533 = vmatpush1.bf16.msra.mxu0 0
      %534 = vmatprep.subr.bf16.mxu0 0
      %535 = vmatpush1.bf16.msra.mxu0 0
      %536 = vmatprep.subr.bf16.mxu0 0
      %537 = vmatpush1.bf16.msra.mxu0 0
      %538 = vmatprep.subr.bf16.mxu0 0
      %539 = vmatpush1.bf16.msra.mxu0 0
      %540 = vmatprep.subr.bf16.mxu0 0
      %541 = vmatpush1.bf16.msra.mxu0 0
      %542 = vmatprep.subr.bf16.mxu0 0
      %543 = vmatpush1.bf16.msra.mxu0 0
      %544 = vmatprep.subr.bf16.mxu0 0
      %545 = vmatpush1.bf16.msra.mxu0 0
      %546 = vmatprep.subr.bf16.mxu0 0
      %547 = vmatpush1.bf16.msra.mxu0 0
      %548 = vmatprep.subr.bf16.mxu0 0
      %549 = vmatpush1.bf16.msra.mxu0 0
      %550 = vmatprep.subr.bf16.mxu0 0
      %551 = vmatpush1.bf16.msra.mxu0 0
      %552 = vmatprep.subr.bf16.mxu0 0
      %553 = vmatpush1.bf16.msra.mxu0 0
      %554 = vmatprep.subr.bf16.mxu0 0
      %555 = vmatpush1.bf16.msra.mxu0 0
      %556 = vmatprep.subr.bf16.mxu0 0
      %557 = vmatpush1.bf16.msra.mxu0 0
      %558 = vmatprep.subr.bf16.mxu0 0
      %559 = vmatpush1.bf16.msra.mxu0 0
      %560 = vmatprep.subr.bf16.mxu0 0
      %561 = vmatpush1.bf16.msra.mxu0 0
      %562 = vmatprep.mubr.bf16.mxu0 0
      %563 = vmatmul.mubr.bf16.gmra.mrb[0].mxu0 %v525
      %v564 = vpop.f32.mrb[0].mxu0
      %v565 = vadd.f32 0.0, %v564
      %v566 = vpop.f32.mrb[0].mxu0
      %v567 = vpop.f32.mrb[0].mxu0
      %v568 = vpop.f32.mrb[0].mxu0
      %569 = vdwg.mxu0
      %v570 = vpack.c.bf16 %v565, %v565
      %v572 = vunpack.c.l.b16 %v570
      %v573 = vpack.c.b16 %v572, %v572
      %574 = vrot.lane.b32.xlu0 %v573, 16
      %v575 = vpop.permute.xlu0 %574
      %vm577 = vcmask 191616
      %578 = vst.msk [vmem:[%s206] sm:$0xf] %vm577, %v575
      %579 = vrot.lane.b32.xlu0 %v212, 104
      %v580 = vpop.permute.xlu0 %579
      %581 = vrot.lane.b32.xlu0 %v337, 104
      %v582 = vpop.permute.xlu0 %581
      %v584 = vsel %vm222, %v580, 0
      %v587 = vsel %vm222, %v582, 0
      %589 = vmatprep.subr.bf16.mxu0 0
      %590 = vmatpush1.bf16.xpose.msra.mxu0 %v587
      %591 = vmatprep.subr.bf16.mxu0 0
      %592 = vmatpush1.bf16.xpose.msra.mxu0 0
      %593 = vmatprep.subr.bf16.mxu0 0
      %594 = vmatpush1.bf16.xpose.msra.mxu0 0
      %595 = vmatprep.subr.bf16.mxu0 0
      %596 = vmatpush1.bf16.xpose.msra.mxu0 0
      %597 = vmatprep.subr.bf16.mxu0 0
      %598 = vmatpush1.bf16.xpose.msra.mxu0 0
      %599 = vmatprep.subr.bf16.mxu0 0
      %600 = vmatpush1.bf16.xpose.msra.mxu0 0
      %601 = vmatprep.subr.bf16.mxu0 0
      %602 = vmatpush1.bf16.xpose.msra.mxu0 0
      %603 = vmatprep.subr.bf16.mxu0 0
      %604 = vmatpush1.bf16.xpose.msra.mxu0 0
      %605 = vmatprep.subr.bf16.mxu0 0
      %606 = vmatpush1.bf16.xpose.msra.mxu0 0
      %607 = vmatprep.subr.bf16.mxu0 0
      %608 = vmatpush1.bf16.xpose.msra.mxu0 0
      %609 = vmatprep.subr.bf16.mxu0 0
      %610 = vmatpush1.bf16.xpose.msra.mxu0 0
      %611 = vmatprep.subr.bf16.mxu0 0
      %612 = vmatpush1.bf16.xpose.msra.mxu0 0
      %613 = vmatprep.subr.bf16.mxu0 0
      %614 = vmatpush1.bf16.xpose.msra.mxu0 0
      %615 = vmatprep.subr.bf16.mxu0 0
      %616 = vmatpush1.bf16.xpose.msra.mxu0 0
      %617 = vmatprep.subr.bf16.mxu0 0
      %618 = vmatpush1.bf16.xpose.msra.mxu0 0
      %619 = vmatprep.subr.bf16.mxu0 0
      %620 = vmatpush1.bf16.xpose.msra.mxu0 0
      %621 = vmatprep.mubr.bf16.mxu0 0
      %622 = vmatmul.mubr.bf16.gmra.mrb[0].mxu0 %v584
      %v623 = vpop.f32.mrb[0].mxu0
      %v624 = vadd.f32 0.0, %v623
      %v625 = vpop.f32.mrb[0].mxu0
      %v626 = vpop.f32.mrb[0].mxu0
      %v627 = vpop.f32.mrb[0].mxu0
      %628 = vdwg.mxu0
      %v629 = vsel %vm221, %v624, -inf
      %v630 = vsel %vm222, %v629, -inf
      %631 = vmax.xlane.f32.xlu0 %v630
      %v632 = vpop.xlane.xlu0 %631
      %v633 = vsub.f32 %v629, %v632
      %v634 = vmul.f32 %v633, 1.442695
      %v635 = vpow.pop %v634
      %v636 = vsel %vm222, %v635, 0.0
      %637 = vadd.xlane.f32.xlu0 %v636
      %v638 = vpop.xlane.xlu0 %637
      %v639 = vrcp.pop %v638
      %v640 = vmul.f32 %v635, %v639
      %v641 = vpack.c.bf16 %v640, %v640
      %642 = vrot.lane.b32.xlu0 %v401, 104
      %v643 = vpop.permute.xlu0 %642
      %v645 = vsel %vm222, %v641, 0
      %v648 = vsel %vm285, %v643, 0
      %650 = vmatprep.subr.bf16.mxu0 0
      %651 = vmatpush1.bf16.msra.mxu0 %v648
      %652 = vmatprep.subr.bf16.mxu0 0
      %653 = vmatpush1.bf16.msra.mxu0 0
      %654 = vmatprep.subr.bf16.mxu0 0
      %655 = vmatpush1.bf16.msra.mxu0 0
      %656 = vmatprep.subr.bf16.mxu0 0
      %657 = vmatpush1.bf16.msra.mxu0 0
      %658 = vmatprep.subr.bf16.mxu0 0
      %659 = vmatpush1.bf16.msra.mxu0 0
      %660 = vmatprep.subr.bf16.mxu0 0
      %661 = vmatpush1.bf16.msra.mxu0 0
      %662 = vmatprep.subr.bf16.mxu0 0
      %663 = vmatpush1.bf16.msra.mxu0 0
      %664 = vmatprep.subr.bf16.mxu0 0
      %665 = vmatpush1.bf16.msra.mxu0 0
      %666 = vmatprep.subr.bf16.mxu0 0
      %667 = vmatpush1.bf16.msra.mxu0 0
      %668 = vmatprep.subr.bf16.mxu0 0
      %669 = vmatpush1.bf16.msra.mxu0 0
      %670 = vmatprep.subr.bf16.mxu0 0
      %671 = vmatpush1.bf16.msra.mxu0 0
      %672 = vmatprep.subr.bf16.mxu0 0
      %673 = vmatpush1.bf16.msra.mxu0 0
      %674 = vmatprep.subr.bf16.mxu0 0
      %675 = vmatpush1.bf16.msra.mxu0 0
      %676 = vmatprep.subr.bf16.mxu0 0
      %677 = vmatpush1.bf16.msra.mxu0 0
      %678 = vmatprep.subr.bf16.mxu0 0
      %679 = vmatpush1.bf16.msra.mxu0 0
      %680 = vmatprep.subr.bf16.mxu0 0
      %681 = vmatpush1.bf16.msra.mxu0 0
      %682 = vmatprep.mubr.bf16.mxu0 0
      %683 = vmatmul.mubr.bf16.gmra.mrb[0].mxu0 %v645
      %v684 = vpop.f32.mrb[0].mxu0
      %v685 = vadd.f32 0.0, %v684
      %v686 = vpop.f32.mrb[0].mxu0
      %v687 = vpop.f32.mrb[0].mxu0
      %v688 = vpop.f32.mrb[0].mxu0
      %689 = vdwg.mxu0
      %v690 = vpack.c.bf16 %v685, %v685
      %v692 = vunpack.c.l.b16 %v690
      %v693 = vpack.c.b16 %v692, %v692
      %694 = vrot.lane.b32.xlu0 %v693, 24
      %v695 = vpop.permute.xlu0 %694
      %vm697 = vcmask 257216
      %698 = vst.msk [vmem:[%s206] sm:$0xf] %vm697, %v695
      %p699 = scmp.lt.s32.totalorder %s21, 1
      %s700 = scalar_select %p699, %s21, 1
      %s701 = smul.addr %s700, 4
      %s702 = scalar_lea.vmem %s4, %s701
      // Predicated region
      $region33: #{prefill.18} parent=31 // pred_check
        %p703 = pneg %p117
      $region34: #{prefill.18} parent=31 // pred_check_branch
        %705 = sbr.rel (%p703) target = $region36
      $region35: #{prefill.18} parent=31 // pred_region
        _
      $region36: #{prefill.18} parent=31 // pred_fallthru
        _
    $region32: #{prefill.18} parent=5 // pred_fallthru
      _
    %p706 = scmp.le.s32.totalorder 2, %s16
    // Predicated region
    $region37: #{prefill.18} parent=5 // pred_check
      %p707 = pneg %p706
    $region38: #{prefill.18} parent=5 // pred_check_branch
      %709 = sbr.rel (%p707) target = $region40
    $region39: #{prefill.18} parent=5 // pred_region
      %s710 = ssub.s32 %s16, 2
      // Predicated region
      $region41: #{prefill.18} parent=39 // pred_check
        %p711 = pneg %p123
      $region42: #{prefill.18} parent=39 // pred_check_branch
        %713 = sbr.rel (%p711) target = $region44
      $region43: #{prefill.18} parent=39 // pred_region
        %p714 = scmp.lt.s32.totalorder %s22, 1
        %s715 = scalar_select %p714, %s22, 1
        %s716 = smul.addr %s715, 4
        %s717 = scalar_lea.vmem %s4, %s716
      $region44: #{prefill.18} parent=39 // pred_fallthru
        _
    $region40: #{prefill.18} parent=5 // pred_fallthru
      _
  $region6: #{prefill.18} parent=0 // loop_footer
    %s20 = sadd.s32 1, %s16
  $region7: #{prefill.18} parent=0 // loop_footer_branch
    %15 = sbr.rel target = $region3
  $region8: #{prefill.18} parent=0 // loop_exit
    _

// kernel: prefill.31
$region0: #{prefill.31}
  #allocation0 [shape = 'u32[]', space=smem, size = 0x4, offset = 0x4, fixed_abs, tag = 'smem constant byte address 0x4 - core index']
  #allocation1 [shape = 'u32[144,128]{1,0:T(1,128)}', space=vmem, size = 0x12000, scoped, tag = 'internal scratch']
  #allocation2 [shape = 'f32[8,256]{1,0:T(8,128)}', space=vmem, size = 0x2000, scoped, tag = 'scratch operand']
  %s0 = inlined_call_operand.vmem [shape: bf16[8,32], index: 0, kind: input, shape index: {}]
  %s1 = inlined_call_operand.vmem [shape: bf16[32,256], index: 1, kind: input, shape index: {}]
  %s2 = inlined_call_operand.vmem [shape: bf16[1,256], index: 2, kind: input, shape index: {}]
  %s3 = inlined_call_operand.vmem [shape: f32[8,256], index: 3, kind: output, shape index: {}]
  %s4 = sld [smem:[#allocation0]]
  $region30: #{prefill.31} parent=0
    _
  %s6 = ssub.s32 1, %s4
  %s7 = scalar_select 0, %s6, %s4
  // Predicated region
  $region2: #{prefill.31} parent=0 // pred_check
    _
  $region3: #{prefill.31} parent=0 // pred_check_branch
    %9 = sbr.rel (0) target = $region5
  $region4: #{prefill.31} parent=0 // pred_region
    _
  $region5: #{prefill.31} parent=0 // pred_fallthru
    _
  // Predicated region
  $region6: #{prefill.31} parent=0 // pred_check
    _
  $region7: #{prefill.31} parent=0 // pred_check_branch
    %11 = sbr.rel (0) target = $region9
  $region8: #{prefill.31} parent=0 // pred_region
    _
  $region9: #{prefill.31} parent=0 // pred_fallthru
    _
  // Predicated region
  $region10: #{prefill.31} parent=0 // pred_check
    _
  $region11: #{prefill.31} parent=0 // pred_check_branch
    %13 = sbr.rel (0) target = $region13
  $region12: #{prefill.31} parent=0 // pred_region
    _
  $region13: #{prefill.31} parent=0 // pred_fallthru
    _
  %p15 = scmp.eq.s32.totalorder 0, 0
  // Predicated region
  $region14: #{prefill.31} parent=0 // pred_check
    %p16 = pneg %p15
  $region15: #{prefill.31} parent=0 // pred_check_branch
    %18 = sbr.rel (%p16) target = $region17
  $region16: #{prefill.31} parent=0 // pred_region
    %19 = vst [vmem:[#allocation2] sm:$0xff] 0.0
    %20 = vst [vmem:[#allocation2 + $0x8] sm:$0xff] 0.0
  $region17: #{prefill.31} parent=0 // pred_fallthru
    _
  %v21 = vld [vmem:[#allocation2] sm:$0xff]
  %v22 = vld [vmem:[#allocation2 + $0x8] sm:$0xff]
  %v23 = vld [vmem:[%s0] sm:$0xf]
  %v24 = vld [vmem:[%s1] sm:$0xff]
  %v25 = vld [vmem:[%s1 + $0x8] sm:$0xff]
  %v26 = vld [vmem:[%s1 + $0x10] sm:$0xff]
  %v27 = vld [vmem:[%s1 + $0x18] sm:$0xff]
  %v32 = vunpack.c.l.b16 %v24
  %v33 = vunpack.c.h.b16 %v24
  %v34 = vunpack.c.l.b16 %v25
  %v35 = vunpack.c.h.b16 %v25
  %v36 = vunpack.c.l.b16 %v26
  %v37 = vunpack.c.h.b16 %v26
  %v38 = vunpack.c.l.b16 %v27
  %v39 = vunpack.c.h.b16 %v27
  %v40 = vpack.c.b16 %v34, %v32
  %v41 = vpack.c.b16 %v35, %v33
  %v42 = vpack.c.b16 %v38, %v36
  %v43 = vpack.c.b16 %v39, %v37
  %vm48 = vcmask 261120
  %v50 = vsel %vm48, %v23, 0
  %52 = vmatprep.subr.bf16.mxu0 %v41
  %53 = vmatpush1.bf16.msra.mxu0 %v40
  %54 = vmatprep.subr.bf16.mxu0 %v43
  %55 = vmatpush1.bf16.msra.mxu0 %v42
  %56 = vmatprep.subr.bf16.mxu0 0
  %57 = vmatpush1.bf16.msra.mxu0 0
  %58 = vmatprep.subr.bf16.mxu0 0
  %59 = vmatpush1.bf16.msra.mxu0 0
  %60 = vmatprep.subr.bf16.mxu0 0
  %61 = vmatpush1.bf16.msra.mxu0 0
  %62 = vmatprep.subr.bf16.mxu0 0
  %63 = vmatpush1.bf16.msra.mxu0 0
  %64 = vmatprep.subr.bf16.mxu0 0
  %65 = vmatpush1.bf16.msra.mxu0 0
  %66 = vmatprep.subr.bf16.mxu0 0
  %67 = vmatpush1.bf16.msra.mxu0 0
  %68 = vmatprep.subr.bf16.mxu0 0
  %69 = vmatpush1.bf16.msra.mxu0 0
  %70 = vmatprep.subr.bf16.mxu0 0
  %71 = vmatpush1.bf16.msra.mxu0 0
  %72 = vmatprep.subr.bf16.mxu0 0
  %73 = vmatpush1.bf16.msra.mxu0 0
  %74 = vmatprep.subr.bf16.mxu0 0
  %75 = vmatpush1.bf16.msra.mxu0 0
  %76 = vmatprep.subr.bf16.mxu0 0
  %77 = vmatpush1.bf16.msra.mxu0 0
  %78 = vmatprep.subr.bf16.mxu0 0
  %79 = vmatpush1.bf16.msra.mxu0 0
  %80 = vmatprep.subr.bf16.mxu0 0
  %81 = vmatpush1.bf16.msra.mxu0 0
  %82 = vmatprep.subr.bf16.mxu0 0
  %83 = vmatpush1.bf16.msra.mxu0 0
  %84 = vmatprep.mubr.bf16.mxu0 0
  %85 = vmatmul.mubr.bf16.gmra.mrb[0].mxu0 %v50
  %v86 = vpop.f32.mrb[0].mxu0
  %v87 = vadd.f32 0.0, %v86
  %v88 = vpop.f32.mrb[0].mxu0
  %v89 = vadd.f32 0.0, %v88
  %v90 = vpop.f32.mrb[0].mxu0
  %v91 = vpop.f32.mrb[0].mxu0
  %92 = vdwg.mxu0
  %v93 = vadd.f32 %v21, %v87
  %v94 = vadd.f32 %v22, %v89
  %95 = vst [vmem:[#allocation2] sm:$0xff] %v93
  %96 = vst [vmem:[#allocation2 + $0x8] sm:$0xff] %v94
  // Predicated region
  $region18: #{prefill.31} parent=0 // pred_check
    %p97 = pneg %p15
  $region19: #{prefill.31} parent=0 // pred_check_branch
    %99 = sbr.rel (%p97) target = $region21
  $region20: #{prefill.31} parent=0 // pred_region
    %v100 = vld [vmem:[#allocation2] sm:$0xff]
    %v101 = vld [vmem:[#allocation2 + $0x8] sm:$0xff]
    %v102 = vld [vmem:[%s2] sm:$0x3]
    %v103 = vunpack.c.l.bf16 %v102
    %v105 = vlaneseq
    %v106 = vshrl.u32 %v105, 7
    %v107 = vsub.s32 0, %v106
    %v108 = vrot.slane %v103, %v107
    %v109 = vlaneseq
    %v110 = vshrl.u32 %v109, 7
    %v111 = vsub.s32 2, %v110
    %v112 = vrot.slane %v103, %v111
    %v115 = vlaneseq
    %v116 = vshrl.u32 %v115, 7
    %v117 = vsub.s32 0, %v116
    %v118 = vrot.slane %v108, %v117
    %v119 = vlaneseq
    %v120 = vshrl.u32 %v119, 7
    %v121 = vsub.s32 0, %v120
    %v122 = vrot.slane %v112, %v121
    %v123 = vadd.f32 %v100, %v118
    %v124 = vadd.f32 %v101, %v122
    %125 = vst [vmem:[%s3] sm:$0xff] %v123
    %126 = vst [vmem:[%s3 + $0x8] sm:$0xff] %v124
  $region21: #{prefill.31} parent=0 // pred_fallthru
    _
  // Predicated region
  $region22: #{prefill.31} parent=0 // pred_check
    _
  $region23: #{prefill.31} parent=0 // pred_check_branch
    %128 = sbr.rel (0) target = $region25
  $region24: #{prefill.31} parent=0 // pred_region
    _
  $region25: #{prefill.31} parent=0 // pred_fallthru
    _
  // Predicated region
  $region26: #{prefill.31} parent=0 // pred_check
    _
  $region27: #{prefill.31} parent=0 // pred_check_branch
    %130 = sbr.rel (0) target = $region29
  $region28: #{prefill.31} parent=0 // pred_region
    _
  $region29: #{prefill.31} parent=0 // pred_fallthru
    _

</llo_original>
